<compile_context>
chip_gen: v5e
topology: v5e:2x2
jax: 0.10.0
libtpu: 0.0.40
codegen_flags: <defaults>
</compile_context>

<pallas_src>
import jax
import jax.numpy as jnp
from jax import lax
from jax.experimental import pallas as pl
from jax.experimental.pallas import tpu as pltpu

INPUT_DIM = 384
HIDDEN = 128
N_HEADS = 4
HEAD_DIM = HIDDEN // N_HEADS
FFN_DIM = HIDDEN * 2
CLS_HIDDEN = 128
N_CLASSES = 2
OUT_PAD = 128            # lane-dense padded logits width
LN_EPS = 1e-5

# ---- packed vector-parameter layout (all offsets/lengths are multiples of 128) ----
OFF_B_IN = 0
OFF_B_QKV = OFF_B_IN + HIDDEN          # 128   (Q part pre-scaled by 1/sqrt(HEAD_DIM))
OFF_B_O = OFF_B_QKV + 3 * HIDDEN       # 512
OFF_G1 = OFF_B_O + HIDDEN              # 640
OFF_BETA1 = OFF_G1 + HIDDEN            # 768
OFF_B1 = OFF_BETA1 + HIDDEN            # 896
OFF_B2 = OFF_B1 + FFN_DIM              # 1152
OFF_G2 = OFF_B2 + HIDDEN               # 1280
OFF_BETA2 = OFF_G2 + HIDDEN            # 1408
OFF_BC1 = OFF_BETA2 + HIDDEN           # 1536
OFF_BC2 = OFF_BC1 + CLS_HIDDEN         # 1664
VEC_LEN = OFF_BC2 + OUT_PAD            # 1792

# ---- packed d_model-row bf16 weight slab column layout (128-aligned) ----
COL_QKV = 0                            # 0:384   (Q columns pre-scaled)
COL_WO = COL_QKV + 3 * HIDDEN          # 384:512
COL_W1 = COL_WO + HIDDEN               # 512:768
COL_WC1 = COL_W1 + FFN_DIM             # 768:896
COL_WC2 = COL_WC1 + CLS_HIDDEN         # 896:1024  (zero-padded beyond N_CLASSES)
COL_WIN = COL_WC2 + OUT_PAD            # 1024:1408 (w_in: 3 stacked (128,128) K-blocks)
COL_W2 = COL_WIN + INPUT_DIM           # 1408:1664 (w2:   2 stacked (128,128) K-blocks)
WF_COLS = COL_W2 + FFN_DIM             # 1664


def _layer_norm(z, gamma, beta):
    mu = jnp.mean(z, axis=-1, keepdims=True)
    zc = z - mu
    var = jnp.mean(zc * zc, axis=-1, keepdims=True)   # biased variance (PyTorch LN)
    return zc * lax.rsqrt(var + LN_EPS) * gamma + beta


def transformer_classifier_kernel(x_ref, wf_ref, vec_ref, out_ref):
    f32, bf16 = jnp.float32, jnp.bfloat16
    B = x_ref.shape[0]

    x = x_ref[...].astype(bf16)            # (B, INPUT_DIM)

    # 1) input projection -> (B, HIDDEN): K=384 split into three 128-row weight blocks
    h = vec_ref[:, OFF_B_IN:OFF_B_IN + HIDDEN]
    for i in range(INPUT_DIM // HIDDEN):   # static 3-way unroll
        h = h + jnp.dot(x[:, i * HIDDEN:(i + 1) * HIDDEN],
                        wf_ref[:, COL_WIN + i * HIDDEN:COL_WIN + (i + 1) * HIDDEN],
                        preferred_element_type=f32)

    # 2) fused QKV projection (1/sqrt(HEAD_DIM) already folded into the Q columns)
    qkv = jnp.dot(h.astype(bf16), wf_ref[:, COL_QKV:COL_QKV + 3 * HIDDEN],
                  preferred_element_type=f32) \
        + vec_ref[:, OFF_B_QKV:OFF_B_QKV + 3 * HIDDEN]
    q = qkv[:, 0:HIDDEN].astype(bf16)
    k = qkv[:, HIDDEN:2 * HIDDEN].astype(bf16)
    v = qkv[:, 2 * HIDDEN:3 * HIDDEN].astype(bf16)

    # 3) multi-head self-attention over the "sequence" axis (= batch rows).
    #    Scores via dot_general (no explicit transpose), stacked along sublanes so a
    #    single softmax chain covers all heads.  Softmax math stays f32.
    s_blocks = []
    for hd in range(N_HEADS):                                     # static 4-way unroll
        lo = hd * HEAD_DIM
        s_blocks.append(lax.dot_general(
            q[:, lo:lo + HEAD_DIM], k[:, lo:lo + HEAD_DIM],
            (((1,), (1,)), ((), ())), preferred_element_type=f32))  # (B, B)
    s = jnp.concatenate(s_blocks, axis=0)                         # (N_HEADS*B, B)
    s = s - jnp.max(s, axis=-1, keepdims=True)
    p = jnp.exp(s)
    p = p * pl.reciprocal(jnp.sum(p, axis=-1, keepdims=True), approx=True)

    #    Head concat folded into the output projection:
    #    concat_h(o_h) @ W_o + b_o == b_o + sum_h o_h @ W_o[h*D:(h+1)*D, :]
    attn = vec_ref[:, OFF_B_O:OFF_B_O + HIDDEN]
    for hd in range(N_HEADS):
        lo = hd * HEAD_DIM
        o_h = jnp.dot(p[hd * B:(hd + 1) * B, :].astype(bf16), v[:, lo:lo + HEAD_DIM],
                      preferred_element_type=f32)                 # (B, HEAD_DIM)
        attn = attn + jnp.dot(o_h.astype(bf16),
                              wf_ref[lo:lo + HEAD_DIM, COL_WO:COL_WO + HIDDEN],
                              preferred_element_type=f32)         # (B, HIDDEN)

    # 4) residual + LayerNorm1 (post-LN, norm_first=False)
    y = _layer_norm(h + attn,
                    vec_ref[:, OFF_G1:OFF_G1 + HIDDEN],
                    vec_ref[:, OFF_BETA1:OFF_BETA1 + HIDDEN])

    # 5) feed-forward (ReLU); down-projection K=256 split into two 128-row blocks
    f = jnp.dot(y.astype(bf16), wf_ref[:, COL_W1:COL_W1 + FFN_DIM],
                preferred_element_type=f32) + vec_ref[:, OFF_B1:OFF_B1 + FFN_DIM]
    f = jnp.maximum(f, 0.0).astype(bf16)
    g = vec_ref[:, OFF_B2:OFF_B2 + HIDDEN]
    for i in range(FFN_DIM // HIDDEN):                            # static 2-way unroll
        g = g + jnp.dot(f[:, i * HIDDEN:(i + 1) * HIDDEN],
                        wf_ref[:, COL_W2 + i * HIDDEN:COL_W2 + (i + 1) * HIDDEN],
                        preferred_element_type=f32)

    # 6) residual + LayerNorm2
    y2 = _layer_norm(y + g,
                     vec_ref[:, OFF_G2:OFF_G2 + HIDDEN],
                     vec_ref[:, OFF_BETA2:OFF_BETA2 + HIDDEN])

    # 7) classifier head: Linear -> ReLU -> Linear (lane-dense padded logits)
    c = jnp.dot(y2.astype(bf16), wf_ref[:, COL_WC1:COL_WC1 + CLS_HIDDEN],
                preferred_element_type=f32) + vec_ref[:, OFF_BC1:OFF_BC1 + CLS_HIDDEN]
    c = jnp.maximum(c, 0.0)
    logits = jnp.dot(c.astype(bf16), wf_ref[:, COL_WC2:COL_WC2 + OUT_PAD],
                     preferred_element_type=f32) + vec_ref[:, OFF_BC2:OFF_BC2 + OUT_PAD]
    out_ref[...] = logits.astype(out_ref.dtype)


def init_params(key):
    """Deterministic synthetic parameters.  Weights are generated in f32 and rounded
    through bf16 (so the bf16 copies used by the kernel are exact); weights are stored
    (in, out) so forward computes x @ W + b (== PyTorch x @ W_pt.T + b)."""
    ks = jax.random.split(key, 8)
    s = 0.05

    def w(k, shape):
        return (s * jax.random.normal(k, shape)).astype(jnp.bfloat16).astype(jnp.float32)

    def b(k, n):
        return (s * jax.random.normal(k, (n,))).astype(jnp.float32)

    return dict(
        w_in=w(ks[0], (INPUT_DIM, HIDDEN)),      b_in=b(ks[0], HIDDEN),
        w_qkv=w(ks[1], (HIDDEN, 3 * HIDDEN)),    b_qkv=b(ks[1], 3 * HIDDEN),
        w_o=w(ks[2], (HIDDEN, HIDDEN)),          b_o=b(ks[2], HIDDEN),
        g1=jnp.ones((HIDDEN,), jnp.float32),     beta1=jnp.zeros((HIDDEN,), jnp.float32),
        w1=w(ks[3], (HIDDEN, FFN_DIM)),          b1=b(ks[3], FFN_DIM),
        w2=w(ks[4], (FFN_DIM, HIDDEN)),          b2=b(ks[4], HIDDEN),
        g2=jnp.ones((HIDDEN,), jnp.float32),     beta2=jnp.zeros((HIDDEN,), jnp.float32),
        wc1=w(ks[5], (HIDDEN, CLS_HIDDEN)),      bc1=b(ks[5], CLS_HIDDEN),
        wc2=w(ks[6], (CLS_HIDDEN, N_CLASSES)),   bc2=b(ks[6], N_CLASSES),
    )


def pack_params(p):
    """Pack 19 params into 3 kernel inputs: one bf16 (128, 1664) weight slab
    (d_model-input weights, plus w_in / w2 stored as stacked 128-row K-blocks)
    and one f32 bias/LN vector."""
    scale = 1.0 / (HEAD_DIM ** 0.5)
    w_qkv = p["w_qkv"].at[:, :HIDDEN].multiply(scale)     # fold 1/sqrt(d) into Q weights
    b_qkv = p["b_qkv"].at[:HIDDEN].multiply(scale)
    wc2_pad = jnp.zeros((CLS_HIDDEN, OUT_PAD), jnp.float32).at[:, :N_CLASSES].set(p["wc2"])
    bc2_pad = jnp.zeros((OUT_PAD,), jnp.float32).at[:N_CLASSES].set(p["bc2"])

    w_in_blocks = [p["w_in"][i * HIDDEN:(i + 1) * HIDDEN, :]
                   for i in range(INPUT_DIM // HIDDEN)]
    w2_blocks = [p["w2"][i * HIDDEN:(i + 1) * HIDDEN, :]
                 for i in range(FFN_DIM // HIDDEN)]

    w_fused = jnp.concatenate(
        [w_qkv, p["w_o"], p["w1"], p["wc1"], wc2_pad] + w_in_blocks + w2_blocks,
        axis=1)                                                        # (128, 1664)
    vec = jnp.concatenate(
        [p["b_in"], b_qkv, p["b_o"], p["g1"], p["beta1"], p["b1"], p["b2"],
         p["g2"], p["beta2"], p["bc1"], bc2_pad])[None, :]             # (1, 1792)

    assert w_fused.shape == (HIDDEN, WF_COLS) and vec.shape == (1, VEC_LEN)
    return dict(w_fused=w_fused.astype(jnp.bfloat16), vec=vec.astype(jnp.float32))


@jax.jit
def transformer_classifier(x, packed):
    B = x.shape[0]
    vmem = pl.BlockSpec(memory_space=pltpu.MemorySpace.VMEM)
    logits_pad = pl.pallas_call(
        transformer_classifier_kernel,
        out_shape=jax.ShapeDtypeStruct((B, OUT_PAD), jnp.float32),
        in_specs=[vmem, vmem, vmem],
        out_specs=vmem,
        compiler_params=pltpu.CompilerParams(vmem_limit_bytes=32 * 1024 * 1024),
        cost_estimate=pl.CostEstimate(flops=3_500_000, transcendentals=300,
                                      bytes_accessed=470_000),
    )(x, packed["w_fused"], packed["vec"])
    return logits_pad[:, :N_CLASSES]


def reference(x, p):
    """Pure-JAX reference mirroring the PyTorch forward (eval mode), using the same
    bf16 matmul inputs with f32 accumulation as the kernel (incl. attention)."""
    bf16, f32 = jnp.bfloat16, jnp.float32

    def mm(a, w):
        return jnp.dot(a.astype(bf16), w.astype(bf16), preferred_element_type=f32)

    h = mm(x, p["w_in"]) + p["b_in"]
    qkv = mm(h, p["w_qkv"]) + p["b_qkv"]
    q, k, v = qkv[:, :HIDDEN], qkv[:, HIDDEN:2 * HIDDEN], qkv[:, 2 * HIDDEN:]
    outs = []
    for hd in range(N_HEADS):
        sl = slice(hd * HEAD_DIM, (hd + 1) * HEAD_DIM)
        qh = (q[:, sl] / (HEAD_DIM ** 0.5)).astype(bf16)
        kh = k[:, sl].astype(bf16)
        s = jnp.dot(qh, kh.T, preferred_element_type=f32)
        p_h = jax.nn.softmax(s, axis=-1)
        outs.append(jnp.dot(p_h.astype(bf16), v[:, sl].astype(bf16),
                            preferred_element_type=f32))
    attn = mm(jnp.concatenate(outs, axis=-1), p["w_o"]) + p["b_o"]
    y = _layer_norm(h + attn, p["g1"], p["beta1"])
    f = mm(jnp.maximum(mm(y, p["w1"]) + p["b1"], 0.0), p["w2"]) + p["b2"]
    y2 = _layer_norm(y + f, p["g2"], p["beta2"])
    c = jnp.maximum(mm(y2, p["wc1"]) + p["bc1"], 0.0)
    return mm(c, p["wc2"]) + p["bc2"]


if __name__ == "__main__":
    key = jax.random.PRNGKey(0)
    kx, kp = jax.random.split(key)
    B = 8
    x = jax.random.normal(kx, (B, INPUT_DIM), dtype=jnp.float32)

    raw = init_params(kp)
    packed = pack_params(raw)

    out = transformer_classifier(x, packed)
    out = jax.block_until_ready(out)

    ref = reference(x, raw)
    assert out.shape == (B, N_CLASSES)
    assert jnp.allclose(out, ref, rtol=5e-3, atol=5e-3), "mismatch vs pure-JAX reference"
    print("KERNEL_OK")
</pallas_src>

<mosaic_0001>
module attributes {stable_mosaic.version = 11 : i64} {
  func.func @transformer_classifier_kernel(%arg0: memref<8x384xf32, #tpu.memory_space<vmem>>, %arg1: memref<128x1664xbf16, #tpu.memory_space<vmem>>, %arg2: memref<1x1792xf32, #tpu.memory_space<vmem>>, %arg3: memref<8x128xf32, #tpu.memory_space<vmem>>) attributes {dimension_semantics = [], scalar_prefetch = 0 : i64, scratch_operands = 0 : i64, tpu.core_type = #tpu.core_type<tc>} {
    %c0 = arith.constant 0 : index
    %c0_0 = arith.constant 0 : index
    %0 = vector.load %arg0[%c0, %c0_0] : memref<8x384xf32, #tpu.memory_space<vmem>>, vector<8x384xf32>
    %1 = arith.truncf %0 : vector<8x384xf32> to vector<8x384xbf16>
    %c0_1 = arith.constant 0 : index
    %c0_2 = arith.constant 0 : index
    %2 = vector.load %arg2[%c0_1, %c0_2] : memref<1x1792xf32, #tpu.memory_space<vmem>>, vector<1x128xf32>
    %3 = vector.extract_strided_slice %1 {offsets = [0, 0], sizes = [8, 128], strides = [1, 1]} : vector<8x384xbf16> to vector<8x128xbf16>
    %c0_3 = arith.constant 0 : index
    %c1024 = arith.constant 1024 : index
    %4 = vector.load %arg1[%c0_3, %c1024] : memref<128x1664xbf16, #tpu.memory_space<vmem>>, vector<128x128xbf16>
    %cst = arith.constant dense<0.000000e+00> : vector<8x128xf32>
    %5 = tpu.matmul %3, %4, %cst {dimension_numbers = #tpu.dot_dimension_numbers<[1], [0], [0], [1], [0, 0, 1, 1], [], []>} : vector<8x128xbf16>, vector<128x128xbf16>, vector<8x128xf32> -> vector<8x128xf32>
    %6 = vector.broadcast %2 : vector<1x128xf32> to vector<8x128xf32>
    %7 = arith.addf %6, %5 : vector<8x128xf32>
    %8 = vector.extract_strided_slice %1 {offsets = [0, 128], sizes = [8, 128], strides = [1, 1]} : vector<8x384xbf16> to vector<8x128xbf16>
    %c0_4 = arith.constant 0 : index
    %c1152 = arith.constant 1152 : index
    %9 = vector.load %arg1[%c0_4, %c1152] : memref<128x1664xbf16, #tpu.memory_space<vmem>>, vector<128x128xbf16>
    %cst_5 = arith.constant dense<0.000000e+00> : vector<8x128xf32>
    %10 = tpu.matmul %8, %9, %cst_5 {dimension_numbers = #tpu.dot_dimension_numbers<[1], [0], [0], [1], [0, 0, 1, 1], [], []>} : vector<8x128xbf16>, vector<128x128xbf16>, vector<8x128xf32> -> vector<8x128xf32>
    %11 = arith.addf %7, %10 : vector<8x128xf32>
    %12 = vector.extract_strided_slice %1 {offsets = [0, 256], sizes = [8, 128], strides = [1, 1]} : vector<8x384xbf16> to vector<8x128xbf16>
    %c0_6 = arith.constant 0 : index
    %c1280 = arith.constant 1280 : index
    %13 = vector.load %arg1[%c0_6, %c1280] : memref<128x1664xbf16, #tpu.memory_space<vmem>>, vector<128x128xbf16>
    %cst_7 = arith.constant dense<0.000000e+00> : vector<8x128xf32>
    %14 = tpu.matmul %12, %13, %cst_7 {dimension_numbers = #tpu.dot_dimension_numbers<[1], [0], [0], [1], [0, 0, 1, 1], [], []>} : vector<8x128xbf16>, vector<128x128xbf16>, vector<8x128xf32> -> vector<8x128xf32>
    %15 = arith.addf %11, %14 : vector<8x128xf32>
    %16 = arith.truncf %15 : vector<8x128xf32> to vector<8x128xbf16>
    %c0_8 = arith.constant 0 : index
    %c0_9 = arith.constant 0 : index
    %17 = vector.load %arg1[%c0_8, %c0_9] : memref<128x1664xbf16, #tpu.memory_space<vmem>>, vector<128x384xbf16>
    %cst_10 = arith.constant dense<0.000000e+00> : vector<8x384xf32>
    %18 = tpu.matmul %16, %17, %cst_10 {dimension_numbers = #tpu.dot_dimension_numbers<[1], [0], [0], [1], [0, 0, 1, 1], [], []>} : vector<8x128xbf16>, vector<128x384xbf16>, vector<8x384xf32> -> vector<8x384xf32>
    %c0_11 = arith.constant 0 : index
    %c128 = arith.constant 128 : index
    %19 = vector.load %arg2[%c0_11, %c128] : memref<1x1792xf32, #tpu.memory_space<vmem>>, vector<1x384xf32>
    %20 = vector.broadcast %19 : vector<1x384xf32> to vector<8x384xf32>
    %21 = arith.addf %18, %20 : vector<8x384xf32>
    %22 = vector.extract_strided_slice %21 {offsets = [0, 0], sizes = [8, 128], strides = [1, 1]} : vector<8x384xf32> to vector<8x128xf32>
    %23 = arith.truncf %22 : vector<8x128xf32> to vector<8x128xbf16>
    %24 = vector.extract_strided_slice %21 {offsets = [0, 128], sizes = [8, 128], strides = [1, 1]} : vector<8x384xf32> to vector<8x128xf32>
    %25 = arith.truncf %24 : vector<8x128xf32> to vector<8x128xbf16>
    %26 = vector.extract_strided_slice %21 {offsets = [0, 256], sizes = [8, 128], strides = [1, 1]} : vector<8x384xf32> to vector<8x128xf32>
    %27 = arith.truncf %26 : vector<8x128xf32> to vector<8x128xbf16>
    %28 = vector.extract_strided_slice %23 {offsets = [0, 0], sizes = [8, 32], strides = [1, 1]} : vector<8x128xbf16> to vector<8x32xbf16>
    %29 = vector.extract_strided_slice %25 {offsets = [0, 0], sizes = [8, 32], strides = [1, 1]} : vector<8x128xbf16> to vector<8x32xbf16>
    %cst_12 = arith.constant dense<0.000000e+00> : vector<8x8xf32>
    %30 = tpu.matmul %28, %29, %cst_12 {dimension_numbers = #tpu.dot_dimension_numbers<[1], [1], [0], [0], [0, 0, 1, 0], [], []>} : vector<8x32xbf16>, vector<8x32xbf16>, vector<8x8xf32> -> vector<8x8xf32>
    %31 = vector.extract_strided_slice %23 {offsets = [0, 32], sizes = [8, 32], strides = [1, 1]} : vector<8x128xbf16> to vector<8x32xbf16>
    %32 = vector.extract_strided_slice %25 {offsets = [0, 32], sizes = [8, 32], strides = [1, 1]} : vector<8x128xbf16> to vector<8x32xbf16>
    %cst_13 = arith.constant dense<0.000000e+00> : vector<8x8xf32>
    %33 = tpu.matmul %31, %32, %cst_13 {dimension_numbers = #tpu.dot_dimension_numbers<[1], [1], [0], [0], [0, 0, 1, 0], [], []>} : vector<8x32xbf16>, vector<8x32xbf16>, vector<8x8xf32> -> vector<8x8xf32>
    %34 = vector.extract_strided_slice %23 {offsets = [0, 64], sizes = [8, 32], strides = [1, 1]} : vector<8x128xbf16> to vector<8x32xbf16>
    %35 = vector.extract_strided_slice %25 {offsets = [0, 64], sizes = [8, 32], strides = [1, 1]} : vector<8x128xbf16> to vector<8x32xbf16>
    %cst_14 = arith.constant dense<0.000000e+00> : vector<8x8xf32>
    %36 = tpu.matmul %34, %35, %cst_14 {dimension_numbers = #tpu.dot_dimension_numbers<[1], [1], [0], [0], [0, 0, 1, 0], [], []>} : vector<8x32xbf16>, vector<8x32xbf16>, vector<8x8xf32> -> vector<8x8xf32>
    %37 = vector.extract_strided_slice %23 {offsets = [0, 96], sizes = [8, 32], strides = [1, 1]} : vector<8x128xbf16> to vector<8x32xbf16>
    %38 = vector.extract_strided_slice %25 {offsets = [0, 96], sizes = [8, 32], strides = [1, 1]} : vector<8x128xbf16> to vector<8x32xbf16>
    %cst_15 = arith.constant dense<0.000000e+00> : vector<8x8xf32>
    %39 = tpu.matmul %37, %38, %cst_15 {dimension_numbers = #tpu.dot_dimension_numbers<[1], [1], [0], [0], [0, 0, 1, 0], [], []>} : vector<8x32xbf16>, vector<8x32xbf16>, vector<8x8xf32> -> vector<8x8xf32>
    %40 = tpu.concatenate %30, %33, %36, %39 in 0 : vector<8x8xf32>, vector<8x8xf32>, vector<8x8xf32>, vector<8x8xf32> -> vector<32x8xf32>
    %cst_16 = arith.constant dense<0xFF800000> : vector<32xf32>
    %41 = vector.multi_reduction <maximumf>, %40, %cst_16 [1] : vector<32x8xf32> to vector<32xf32>
    %42 = vector.shape_cast %41 : vector<32xf32> to vector<32x1xf32>
    %43 = vector.broadcast %42 : vector<32x1xf32> to vector<32x8xf32>
    %44 = arith.subf %40, %43 : vector<32x8xf32>
    %45 = math.exp %44 : vector<32x8xf32>
    %cst_17 = arith.constant dense<0.000000e+00> : vector<32xf32>
    %46 = vector.multi_reduction <add>, %45, %cst_17 [1] : vector<32x8xf32> to vector<32xf32>
    %47 = vector.shape_cast %46 : vector<32xf32> to vector<32x1xf32>
    %48 = tpu.reciprocal %47 {approx = true} : vector<32x1xf32> -> vector<32x1xf32>
    %49 = vector.broadcast %48 : vector<32x1xf32> to vector<32x8xf32>
    %50 = arith.mulf %45, %49 : vector<32x8xf32>
    %c0_18 = arith.constant 0 : index
    %c512 = arith.constant 512 : index
    %51 = vector.load %arg2[%c0_18, %c512] : memref<1x1792xf32, #tpu.memory_space<vmem>>, vector<1x128xf32>
    %52 = vector.extract_strided_slice %50 {offsets = [0, 0], sizes = [8, 8], strides = [1, 1]} : vector<32x8xf32> to vector<8x8xf32>
    %53 = arith.truncf %52 : vector<8x8xf32> to vector<8x8xbf16>
    %54 = vector.extract_strided_slice %27 {offsets = [0, 0], sizes = [8, 32], strides = [1, 1]} : vector<8x128xbf16> to vector<8x32xbf16>
    %cst_19 = arith.constant dense<0.000000e+00> : vector<8x32xf32>
    %55 = tpu.matmul %53, %54, %cst_19 {dimension_numbers = #tpu.dot_dimension_numbers<[1], [0], [0], [1], [0, 0, 1, 1], [], []>} : vector<8x8xbf16>, vector<8x32xbf16>, vector<8x32xf32> -> vector<8x32xf32>
    %56 = arith.truncf %55 : vector<8x32xf32> to vector<8x32xbf16>
    %c0_20 = arith.constant 0 : index
    %c384 = arith.constant 384 : index
    %57 = vector.load %arg1[%c0_20, %c384] : memref<128x1664xbf16, #tpu.memory_space<vmem>>, vector<32x128xbf16>
    %cst_21 = arith.constant dense<0.000000e+00> : vector<8x128xf32>
    %58 = tpu.matmul %56, %57, %cst_21 {dimension_numbers = #tpu.dot_dimension_numbers<[1], [0], [0], [1], [0, 0, 1, 1], [], []>} : vector<8x32xbf16>, vector<32x128xbf16>, vector<8x128xf32> -> vector<8x128xf32>
    %59 = vector.broadcast %51 : vector<1x128xf32> to vector<8x128xf32>
    %60 = arith.addf %59, %58 : vector<8x128xf32>
    %61 = vector.extract_strided_slice %50 {offsets = [8, 0], sizes = [8, 8], strides = [1, 1]} : vector<32x8xf32> to vector<8x8xf32>
    %62 = arith.truncf %61 : vector<8x8xf32> to vector<8x8xbf16>
    %63 = vector.extract_strided_slice %27 {offsets = [0, 32], sizes = [8, 32], strides = [1, 1]} : vector<8x128xbf16> to vector<8x32xbf16>
    %cst_22 = arith.constant dense<0.000000e+00> : vector<8x32xf32>
    %64 = tpu.matmul %62, %63, %cst_22 {dimension_numbers = #tpu.dot_dimension_numbers<[1], [0], [0], [1], [0, 0, 1, 1], [], []>} : vector<8x8xbf16>, vector<8x32xbf16>, vector<8x32xf32> -> vector<8x32xf32>
    %65 = arith.truncf %64 : vector<8x32xf32> to vector<8x32xbf16>
    %c32 = arith.constant 32 : index
    %c384_23 = arith.constant 384 : index
    %66 = vector.load %arg1[%c32, %c384_23] : memref<128x1664xbf16, #tpu.memory_space<vmem>>, vector<32x128xbf16>
    %cst_24 = arith.constant dense<0.000000e+00> : vector<8x128xf32>
    %67 = tpu.matmul %65, %66, %cst_24 {dimension_numbers = #tpu.dot_dimension_numbers<[1], [0], [0], [1], [0, 0, 1, 1], [], []>} : vector<8x32xbf16>, vector<32x128xbf16>, vector<8x128xf32> -> vector<8x128xf32>
    %68 = arith.addf %60, %67 : vector<8x128xf32>
    %69 = vector.extract_strided_slice %50 {offsets = [16, 0], sizes = [8, 8], strides = [1, 1]} : vector<32x8xf32> to vector<8x8xf32>
    %70 = arith.truncf %69 : vector<8x8xf32> to vector<8x8xbf16>
    %71 = vector.extract_strided_slice %27 {offsets = [0, 64], sizes = [8, 32], strides = [1, 1]} : vector<8x128xbf16> to vector<8x32xbf16>
    %cst_25 = arith.constant dense<0.000000e+00> : vector<8x32xf32>
    %72 = tpu.matmul %70, %71, %cst_25 {dimension_numbers = #tpu.dot_dimension_numbers<[1], [0], [0], [1], [0, 0, 1, 1], [], []>} : vector<8x8xbf16>, vector<8x32xbf16>, vector<8x32xf32> -> vector<8x32xf32>
    %73 = arith.truncf %72 : vector<8x32xf32> to vector<8x32xbf16>
    %c64 = arith.constant 64 : index
    %c384_26 = arith.constant 384 : index
    %74 = vector.load %arg1[%c64, %c384_26] : memref<128x1664xbf16, #tpu.memory_space<vmem>>, vector<32x128xbf16>
    %cst_27 = arith.constant dense<0.000000e+00> : vector<8x128xf32>
    %75 = tpu.matmul %73, %74, %cst_27 {dimension_numbers = #tpu.dot_dimension_numbers<[1], [0], [0], [1], [0, 0, 1, 1], [], []>} : vector<8x32xbf16>, vector<32x128xbf16>, vector<8x128xf32> -> vector<8x128xf32>
    %76 = arith.addf %68, %75 : vector<8x128xf32>
    %77 = vector.extract_strided_slice %50 {offsets = [24, 0], sizes = [8, 8], strides = [1, 1]} : vector<32x8xf32> to vector<8x8xf32>
    %78 = arith.truncf %77 : vector<8x8xf32> to vector<8x8xbf16>
    %79 = vector.extract_strided_slice %27 {offsets = [0, 96], sizes = [8, 32], strides = [1, 1]} : vector<8x128xbf16> to vector<8x32xbf16>
    %cst_28 = arith.constant dense<0.000000e+00> : vector<8x32xf32>
    %80 = tpu.matmul %78, %79, %cst_28 {dimension_numbers = #tpu.dot_dimension_numbers<[1], [0], [0], [1], [0, 0, 1, 1], [], []>} : vector<8x8xbf16>, vector<8x32xbf16>, vector<8x32xf32> -> vector<8x32xf32>
    %81 = arith.truncf %80 : vector<8x32xf32> to vector<8x32xbf16>
    %c96 = arith.constant 96 : index
    %c384_29 = arith.constant 384 : index
    %82 = vector.load %arg1[%c96, %c384_29] : memref<128x1664xbf16, #tpu.memory_space<vmem>>, vector<32x128xbf16>
    %cst_30 = arith.constant dense<0.000000e+00> : vector<8x128xf32>
    %83 = tpu.matmul %81, %82, %cst_30 {dimension_numbers = #tpu.dot_dimension_numbers<[1], [0], [0], [1], [0, 0, 1, 1], [], []>} : vector<8x32xbf16>, vector<32x128xbf16>, vector<8x128xf32> -> vector<8x128xf32>
    %84 = arith.addf %76, %83 : vector<8x128xf32>
    %85 = arith.addf %15, %84 : vector<8x128xf32>
    %c0_31 = arith.constant 0 : index
    %c640 = arith.constant 640 : index
    %86 = vector.load %arg2[%c0_31, %c640] : memref<1x1792xf32, #tpu.memory_space<vmem>>, vector<1x128xf32>
    %c0_32 = arith.constant 0 : index
    %c768 = arith.constant 768 : index
    %87 = vector.load %arg2[%c0_32, %c768] : memref<1x1792xf32, #tpu.memory_space<vmem>>, vector<1x128xf32>
    %cst_33 = arith.constant dense<0.000000e+00> : vector<8xf32>
    %88 = vector.multi_reduction <add>, %85, %cst_33 [1] : vector<8x128xf32> to vector<8xf32>
    %89 = vector.shape_cast %88 : vector<8xf32> to vector<8x1xf32>
    %cst_34 = arith.constant 1.280000e+02 : f32
    %90 = vector.broadcast %cst_34 : f32 to vector<8x1xf32>
    %91 = arith.divf %89, %90 : vector<8x1xf32>
    %92 = vector.broadcast %91 : vector<8x1xf32> to vector<8x128xf32>
    %93 = arith.subf %85, %92 : vector<8x128xf32>
    %94 = arith.mulf %93, %93 : vector<8x128xf32>
    %cst_35 = arith.constant dense<0.000000e+00> : vector<8xf32>
    %95 = vector.multi_reduction <add>, %94, %cst_35 [1] : vector<8x128xf32> to vector<8xf32>
    %96 = vector.shape_cast %95 : vector<8xf32> to vector<8x1xf32>
    %cst_36 = arith.constant 1.280000e+02 : f32
    %97 = vector.broadcast %cst_36 : f32 to vector<8x1xf32>
    %98 = arith.divf %96, %97 : vector<8x1xf32>
    %cst_37 = arith.constant 9.99999974E-6 : f32
    %99 = vector.broadcast %cst_37 : f32 to vector<8x1xf32>
    %100 = arith.addf %98, %99 : vector<8x1xf32>
    %101 = math.rsqrt %100 : vector<8x1xf32>
    %102 = vector.broadcast %101 : vector<8x1xf32> to vector<8x128xf32>
    %103 = arith.mulf %93, %102 : vector<8x128xf32>
    %104 = vector.broadcast %86 : vector<1x128xf32> to vector<8x128xf32>
    %105 = arith.mulf %103, %104 : vector<8x128xf32>
    %106 = vector.broadcast %87 : vector<1x128xf32> to vector<8x128xf32>
    %107 = arith.addf %105, %106 : vector<8x128xf32>
    %108 = arith.truncf %107 : vector<8x128xf32> to vector<8x128xbf16>
    %c0_38 = arith.constant 0 : index
    %c512_39 = arith.constant 512 : index
    %109 = vector.load %arg1[%c0_38, %c512_39] : memref<128x1664xbf16, #tpu.memory_space<vmem>>, vector<128x256xbf16>
    %cst_40 = arith.constant dense<0.000000e+00> : vector<8x256xf32>
    %110 = tpu.matmul %108, %109, %cst_40 {dimension_numbers = #tpu.dot_dimension_numbers<[1], [0], [0], [1], [0, 0, 1, 1], [], []>} : vector<8x128xbf16>, vector<128x256xbf16>, vector<8x256xf32> -> vector<8x256xf32>
    %c0_41 = arith.constant 0 : index
    %c896 = arith.constant 896 : index
    %111 = vector.load %arg2[%c0_41, %c896] : memref<1x1792xf32, #tpu.memory_space<vmem>>, vector<1x256xf32>
    %112 = vector.broadcast %111 : vector<1x256xf32> to vector<8x256xf32>
    %113 = arith.addf %110, %112 : vector<8x256xf32>
    %cst_42 = arith.constant 0.000000e+00 : f32
    %114 = vector.broadcast %cst_42 : f32 to vector<8x256xf32>
    %115 = arith.maximumf %113, %114 : vector<8x256xf32>
    %116 = arith.truncf %115 : vector<8x256xf32> to vector<8x256xbf16>
    %c0_43 = arith.constant 0 : index
    %c1152_44 = arith.constant 1152 : index
    %117 = vector.load %arg2[%c0_43, %c1152_44] : memref<1x1792xf32, #tpu.memory_space<vmem>>, vector<1x128xf32>
    %118 = vector.extract_strided_slice %116 {offsets = [0, 0], sizes = [8, 128], strides = [1, 1]} : vector<8x256xbf16> to vector<8x128xbf16>
    %c0_45 = arith.constant 0 : index
    %c1408 = arith.constant 1408 : index
    %119 = vector.load %arg1[%c0_45, %c1408] : memref<128x1664xbf16, #tpu.memory_space<vmem>>, vector<128x128xbf16>
    %cst_46 = arith.constant dense<0.000000e+00> : vector<8x128xf32>
    %120 = tpu.matmul %118, %119, %cst_46 {dimension_numbers = #tpu.dot_dimension_numbers<[1], [0], [0], [1], [0, 0, 1, 1], [], []>} : vector<8x128xbf16>, vector<128x128xbf16>, vector<8x128xf32> -> vector<8x128xf32>
    %121 = vector.broadcast %117 : vector<1x128xf32> to vector<8x128xf32>
    %122 = arith.addf %121, %120 : vector<8x128xf32>
    %123 = vector.extract_strided_slice %116 {offsets = [0, 128], sizes = [8, 128], strides = [1, 1]} : vector<8x256xbf16> to vector<8x128xbf16>
    %c0_47 = arith.constant 0 : index
    %c1536 = arith.constant 1536 : index
    %124 = vector.load %arg1[%c0_47, %c1536] : memref<128x1664xbf16, #tpu.memory_space<vmem>>, vector<128x128xbf16>
    %cst_48 = arith.constant dense<0.000000e+00> : vector<8x128xf32>
    %125 = tpu.matmul %123, %124, %cst_48 {dimension_numbers = #tpu.dot_dimension_numbers<[1], [0], [0], [1], [0, 0, 1, 1], [], []>} : vector<8x128xbf16>, vector<128x128xbf16>, vector<8x128xf32> -> vector<8x128xf32>
    %126 = arith.addf %122, %125 : vector<8x128xf32>
    %127 = arith.addf %107, %126 : vector<8x128xf32>
    %c0_49 = arith.constant 0 : index
    %c1280_50 = arith.constant 1280 : index
    %128 = vector.load %arg2[%c0_49, %c1280_50] : memref<1x1792xf32, #tpu.memory_space<vmem>>, vector<1x128xf32>
    %c0_51 = arith.constant 0 : index
    %c1408_52 = arith.constant 1408 : index
    %129 = vector.load %arg2[%c0_51, %c1408_52] : memref<1x1792xf32, #tpu.memory_space<vmem>>, vector<1x128xf32>
    %cst_53 = arith.constant dense<0.000000e+00> : vector<8xf32>
    %130 = vector.multi_reduction <add>, %127, %cst_53 [1] : vector<8x128xf32> to vector<8xf32>
    %131 = vector.shape_cast %130 : vector<8xf32> to vector<8x1xf32>
    %cst_54 = arith.constant 1.280000e+02 : f32
    %132 = vector.broadcast %cst_54 : f32 to vector<8x1xf32>
    %133 = arith.divf %131, %132 : vector<8x1xf32>
    %134 = vector.broadcast %133 : vector<8x1xf32> to vector<8x128xf32>
    %135 = arith.subf %127, %134 : vector<8x128xf32>
    %136 = arith.mulf %135, %135 : vector<8x128xf32>
    %cst_55 = arith.constant dense<0.000000e+00> : vector<8xf32>
    %137 = vector.multi_reduction <add>, %136, %cst_55 [1] : vector<8x128xf32> to vector<8xf32>
    %138 = vector.shape_cast %137 : vector<8xf32> to vector<8x1xf32>
    %cst_56 = arith.constant 1.280000e+02 : f32
    %139 = vector.broadcast %cst_56 : f32 to vector<8x1xf32>
    %140 = arith.divf %138, %139 : vector<8x1xf32>
    %cst_57 = arith.constant 9.99999974E-6 : f32
    %141 = vector.broadcast %cst_57 : f32 to vector<8x1xf32>
    %142 = arith.addf %140, %141 : vector<8x1xf32>
    %143 = math.rsqrt %142 : vector<8x1xf32>
    %144 = vector.broadcast %143 : vector<8x1xf32> to vector<8x128xf32>
    %145 = arith.mulf %135, %144 : vector<8x128xf32>
    %146 = vector.broadcast %128 : vector<1x128xf32> to vector<8x128xf32>
    %147 = arith.mulf %145, %146 : vector<8x128xf32>
    %148 = vector.broadcast %129 : vector<1x128xf32> to vector<8x128xf32>
    %149 = arith.addf %147, %148 : vector<8x128xf32>
    %150 = arith.truncf %149 : vector<8x128xf32> to vector<8x128xbf16>
    %c0_58 = arith.constant 0 : index
    %c768_59 = arith.constant 768 : index
    %151 = vector.load %arg1[%c0_58, %c768_59] : memref<128x1664xbf16, #tpu.memory_space<vmem>>, vector<128x128xbf16>
    %cst_60 = arith.constant dense<0.000000e+00> : vector<8x128xf32>
    %152 = tpu.matmul %150, %151, %cst_60 {dimension_numbers = #tpu.dot_dimension_numbers<[1], [0], [0], [1], [0, 0, 1, 1], [], []>} : vector<8x128xbf16>, vector<128x128xbf16>, vector<8x128xf32> -> vector<8x128xf32>
    %c0_61 = arith.constant 0 : index
    %c1536_62 = arith.constant 1536 : index
    %153 = vector.load %arg2[%c0_61, %c1536_62] : memref<1x1792xf32, #tpu.memory_space<vmem>>, vector<1x128xf32>
    %154 = vector.broadcast %153 : vector<1x128xf32> to vector<8x128xf32>
    %155 = arith.addf %152, %154 : vector<8x128xf32>
    %cst_63 = arith.constant 0.000000e+00 : f32
    %156 = vector.broadcast %cst_63 : f32 to vector<8x128xf32>
    %157 = arith.maximumf %155, %156 : vector<8x128xf32>
    %158 = arith.truncf %157 : vector<8x128xf32> to vector<8x128xbf16>
    %c0_64 = arith.constant 0 : index
    %c896_65 = arith.constant 896 : index
    %159 = vector.load %arg1[%c0_64, %c896_65] : memref<128x1664xbf16, #tpu.memory_space<vmem>>, vector<128x128xbf16>
    %cst_66 = arith.constant dense<0.000000e+00> : vector<8x128xf32>
    %160 = tpu.matmul %158, %159, %cst_66 {dimension_numbers = #tpu.dot_dimension_numbers<[1], [0], [0], [1], [0, 0, 1, 1], [], []>} : vector<8x128xbf16>, vector<128x128xbf16>, vector<8x128xf32> -> vector<8x128xf32>
    %c0_67 = arith.constant 0 : index
    %c1664 = arith.constant 1664 : index
    %161 = vector.load %arg2[%c0_67, %c1664] : memref<1x1792xf32, #tpu.memory_space<vmem>>, vector<1x128xf32>
    %162 = vector.broadcast %161 : vector<1x128xf32> to vector<8x128xf32>
    %163 = arith.addf %160, %162 : vector<8x128xf32>
    %c0_68 = arith.constant 0 : index
    %c0_69 = arith.constant 0 : index
    %164 = vector.load %arg3[%c0_68, %c0_69] : memref<8x128xf32, #tpu.memory_space<vmem>>, vector<8x128xf32>
    tpu.vector_store %arg3[%c0_68, %c0_69], %163 {strides = array<i32>} : memref<8x128xf32, #tpu.memory_space<vmem>>, vector<8x128xf32>,
    return
  }
}

</mosaic_0001>

<llo_original>
// kernel: transformer_classifier.1
$region0: #{transformer_classifier.1}
  #allocation0 [shape = 'u32[]', space=smem, size = 0x4, offset = 0x4, fixed_abs, tag = 'smem constant byte address 0x4 - core index']
  #allocation1 [shape = 'u32[72,128]{1,0:T(1,128)}', space=vmem, size = 0x9000, scoped, tag = 'internal scratch']
  %s0 = inlined_call_operand.hbm [shape: f32[8,384], index: 0, kind: input, shape index: {}]
  %s1 = inlined_call_operand.hbm [shape: bf16[128,1664], index: 1, kind: input, shape index: {}]
  %s2 = inlined_call_operand.hbm [shape: f32[1,1792], index: 2, kind: input, shape index: {}]
  %s3 = inlined_call_operand.vmem [shape: f32[8,128], index: 3, kind: output, shape index: {}]
  %s4 = sld [smem:[#allocation0]]
  $region34: #{transformer_classifier.1} parent=0
    _
  %s6 = ssub.s32 1, %s4
  %s7 = scalar_select 0, %s6, %s4
  $region1: #{transformer_classifier.1} parent=0
    #allocation2 [shape = 'u8[12288]{0}', space=vmem, size = 0x3000, scoped, tag = 'input window, operand 0, single buffered']
    #allocation3 [shape = 's32[1]{0}', space=sflag, size = 0x4, scoped, tag = 'scoped memory for transformer_classifier.1']
    #allocation4 [shape = 'u8[425984]{0}', space=vmem, size = 0x68000, scoped, tag = 'input window, operand 1, single buffered']
    #allocation5 [shape = 's32[1]{0}', space=sflag, size = 0x4, scoped, tag = 'scoped memory for transformer_classifier.1']
    #allocation6 [shape = 'u8[7168]{0}', space=vmem, size = 0x1c00, scoped, tag = 'input window, operand 2, single buffered']
    %8 = vsyncpa [#allocation3], 0
    %9 = vsyncpa [#allocation5], 0
    // Predicated region
    $region2: #{transformer_classifier.1} parent=1 // pred_check
      _
    $region3: #{transformer_classifier.1} parent=1 // pred_check_branch
      %11 = sbr.rel (0) target = $region5
    $region4: #{transformer_classifier.1} parent=1 // pred_region
      %13 = vsyncadd [#allocation3], 0
      %s15 = sshll.u32 %s0, 4
      %s16 = int_to_ptr.hbm [resolvable:$true] %s15
      %s17 = sshll.u32 [#allocation2], 4
      %s18 = int_to_ptr.vmem [resolvable:$true] %s17
      %20 = dma.hbm_to_vmem [thread:$0]  %s16, 384, %s18, [#allocation3]
    $region5: #{transformer_classifier.1} parent=1 // pred_fallthru
      _
    // Predicated region
    $region6: #{transformer_classifier.1} parent=1 // pred_check
      _
    $region7: #{transformer_classifier.1} parent=1 // pred_check_branch
      %22 = sbr.rel (0) target = $region9
    $region8: #{transformer_classifier.1} parent=1 // pred_region
      %24 = vsyncadd [#allocation5], 0
      %s25 = sshll.u32 %s1, 4
      %s26 = int_to_ptr.hbm [resolvable:$true] %s25
      %s27 = sshll.u32 [#allocation4], 4
      %s28 = int_to_ptr.vmem [resolvable:$true] %s27
      %33 = dma.hbm_to_vmem [thread:$0]  %s26, 13312, %s28, [#allocation5], 832, 832, 52
    $region9: #{transformer_classifier.1} parent=1 // pred_fallthru
      _
    // Predicated region
    $region10: #{transformer_classifier.1} parent=1 // pred_check
      _
    $region11: #{transformer_classifier.1} parent=1 // pred_check_branch
      %35 = sbr.rel (0) target = $region13
    $region12: #{transformer_classifier.1} parent=1 // pred_region
      %37 = vsyncadd [#allocation5], 0
      %s39 = sshll.u32 %s2, 4
      %s40 = int_to_ptr.hbm [resolvable:$true] %s39
      %s41 = sshll.u32 [#allocation6], 4
      %s42 = int_to_ptr.vmem [resolvable:$true] %s41
      %44 = dma.hbm_to_vmem [thread:$0]  %s40, 224, %s42, [#allocation5]
    $region13: #{transformer_classifier.1} parent=1 // pred_fallthru
      _
    // Predicated region
    $region14: #{transformer_classifier.1} parent=1 // pred_check
      _
    $region15: #{transformer_classifier.1} parent=1 // pred_check_branch
      %46 = sbr.rel (0) target = $region17
    $region16: #{transformer_classifier.1} parent=1 // pred_region
      %48 = dma.done [#allocation3], 384
    $region17: #{transformer_classifier.1} parent=1 // pred_fallthru
      _
    // Predicated region
    $region18: #{transformer_classifier.1} parent=1 // pred_check
      _
    $region19: #{transformer_classifier.1} parent=1 // pred_check_branch
      %50 = sbr.rel (0) target = $region21
    $region20: #{transformer_classifier.1} parent=1 // pred_region
      %52 = dma.done [#allocation5], 13312
    $region21: #{transformer_classifier.1} parent=1 // pred_fallthru
      _
    // Predicated region
    $region22: #{transformer_classifier.1} parent=1 // pred_check
      _
    $region23: #{transformer_classifier.1} parent=1 // pred_check_branch
      %54 = sbr.rel (0) target = $region25
    $region24: #{transformer_classifier.1} parent=1 // pred_region
      %56 = dma.done [#allocation5], 224
    $region25: #{transformer_classifier.1} parent=1 // pred_fallthru
      _
    %v58 = vld [vmem:[#allocation2] sm:$0xff]
    %v59 = vld [vmem:[#allocation2 + $0x8] sm:$0xff]
    %v60 = vld [vmem:[#allocation2 + $0x10] sm:$0xff]
    %v61 = vpack.c.bf16 %v59, %v58
    %v62 = vpack.c.bf16 %v60, %v60
    %v63 = vld [vmem:[#allocation6] sm:$0x1]
    %v64 = vld [vmem:[#allocation4 + $0x20] sm:$0xf]
    %v65 = vld [vmem:[#allocation4 + $0x54] sm:$0xf]
    %v66 = vld [vmem:[#allocation4 + $0x88] sm:$0xf]
    %v67 = vld [vmem:[#allocation4 + $0xbc] sm:$0xf]
    %v68 = vld [vmem:[#allocation4 + $0xf0] sm:$0xf]
    %v69 = vld [vmem:[#allocation4 + $0x124] sm:$0xf]
    %v70 = vld [vmem:[#allocation4 + $0x158] sm:$0xf]
    %v71 = vld [vmem:[#allocation4 + $0x18c] sm:$0xf]
    %v72 = vld [vmem:[#allocation4 + $0x1c0] sm:$0xf]
    %v73 = vld [vmem:[#allocation4 + $0x1f4] sm:$0xf]
    %v74 = vld [vmem:[#allocation4 + $0x228] sm:$0xf]
    %v75 = vld [vmem:[#allocation4 + $0x25c] sm:$0xf]
    %v76 = vld [vmem:[#allocation4 + $0x290] sm:$0xf]
    %v77 = vld [vmem:[#allocation4 + $0x2c4] sm:$0xf]
    %v78 = vld [vmem:[#allocation4 + $0x2f8] sm:$0xf]
    %v79 = vld [vmem:[#allocation4 + $0x32c] sm:$0xf]
    %v96 = vunpack.c.l.b16 %v64
    %v97 = vunpack.c.l.b16 %v65
    %v98 = vunpack.c.l.b16 %v66
    %v99 = vunpack.c.l.b16 %v67
    %v100 = vunpack.c.l.b16 %v68
    %v101 = vunpack.c.l.b16 %v69
    %v102 = vunpack.c.l.b16 %v70
    %v103 = vunpack.c.l.b16 %v71
    %v104 = vunpack.c.l.b16 %v72
    %v105 = vunpack.c.l.b16 %v73
    %v106 = vunpack.c.l.b16 %v74
    %v107 = vunpack.c.l.b16 %v75
    %v108 = vunpack.c.l.b16 %v76
    %v109 = vunpack.c.l.b16 %v77
    %v110 = vunpack.c.l.b16 %v78
    %v111 = vunpack.c.l.b16 %v79
    %v112 = vpack.c.b16 %v97, %v96
    %v113 = vpack.c.b16 %v99, %v98
    %v114 = vpack.c.b16 %v101, %v100
    %v115 = vpack.c.b16 %v103, %v102
    %v116 = vpack.c.b16 %v105, %v104
    %v117 = vpack.c.b16 %v107, %v106
    %v118 = vpack.c.b16 %v109, %v108
    %v119 = vpack.c.b16 %v111, %v110
    %128 = vmatpush.bf16.msra.mxu0 %v119
    %129 = vmatpush.bf16.msra.mxu0 %v118
    %130 = vmatpush.bf16.msra.mxu0 %v117
    %131 = vmatpush.bf16.msra.mxu0 %v116
    %132 = vmatpush.bf16.msra.mxu0 %v115
    %133 = vmatpush.bf16.msra.mxu0 %v114
    %134 = vmatpush.bf16.msra.mxu0 %v113
    %135 = vmatpush.bf16.msra.mxu0 %v112
    %136 = vmatmul.bf16.gmra.mxu0 %v61
    %v137 = vpop.f32.mrf.mxu0
    %v138 = vadd.f32 0.0, %v137
    %v139 = vpop.f32.mrf.mxu0
    %140 = vdwg.mxu0
    %v142 = vperm.slane %v63, 0
    %v144 = vadd.f32 %v142, %v138
    %v145 = vld [vmem:[#allocation4 + $0x24] sm:$0xf]
    %v146 = vld [vmem:[#allocation4 + $0x58] sm:$0xf]
    %v147 = vld [vmem:[#allocation4 + $0x8c] sm:$0xf]
    %v148 = vld [vmem:[#allocation4 + $0xc0] sm:$0xf]
    %v149 = vld [vmem:[#allocation4 + $0xf4] sm:$0xf]
    %v150 = vld [vmem:[#allocation4 + $0x128] sm:$0xf]
    %v151 = vld [vmem:[#allocation4 + $0x15c] sm:$0xf]
    %v152 = vld [vmem:[#allocation4 + $0x190] sm:$0xf]
    %v153 = vld [vmem:[#allocation4 + $0x1c4] sm:$0xf]
    %v154 = vld [vmem:[#allocation4 + $0x1f8] sm:$0xf]
    %v155 = vld [vmem:[#allocation4 + $0x22c] sm:$0xf]
    %v156 = vld [vmem:[#allocation4 + $0x260] sm:$0xf]
    %v157 = vld [vmem:[#allocation4 + $0x294] sm:$0xf]
    %v158 = vld [vmem:[#allocation4 + $0x2c8] sm:$0xf]
    %v159 = vld [vmem:[#allocation4 + $0x2fc] sm:$0xf]
    %v160 = vld [vmem:[#allocation4 + $0x330] sm:$0xf]
    %v162 = vunpack.c.h.b16 %v61
    %v163 = vpack.c.b16 %v162, %v162
    %v181 = vunpack.c.l.b16 %v145
    %v182 = vunpack.c.l.b16 %v146
    %v183 = vunpack.c.l.b16 %v147
    %v184 = vunpack.c.l.b16 %v148
    %v185 = vunpack.c.l.b16 %v149
    %v186 = vunpack.c.l.b16 %v150
    %v187 = vunpack.c.l.b16 %v151
    %v188 = vunpack.c.l.b16 %v152
    %v189 = vunpack.c.l.b16 %v153
    %v190 = vunpack.c.l.b16 %v154
    %v191 = vunpack.c.l.b16 %v155
    %v192 = vunpack.c.l.b16 %v156
    %v193 = vunpack.c.l.b16 %v157
    %v194 = vunpack.c.l.b16 %v158
    %v195 = vunpack.c.l.b16 %v159
    %v196 = vunpack.c.l.b16 %v160
    %v197 = vpack.c.b16 %v182, %v181
    %v198 = vpack.c.b16 %v184, %v183
    %v199 = vpack.c.b16 %v186, %v185
    %v200 = vpack.c.b16 %v188, %v187
    %v201 = vpack.c.b16 %v190, %v189
    %v202 = vpack.c.b16 %v192, %v191
    %v203 = vpack.c.b16 %v194, %v193
    %v204 = vpack.c.b16 %v196, %v195
    %213 = vmatpush.bf16.msra.mxu0 %v204
    %214 = vmatpush.bf16.msra.mxu0 %v203
    %215 = vmatpush.bf16.msra.mxu0 %v202
    %216 = vmatpush.bf16.msra.mxu0 %v201
    %217 = vmatpush.bf16.msra.mxu0 %v200
    %218 = vmatpush.bf16.msra.mxu0 %v199
    %219 = vmatpush.bf16.msra.mxu0 %v198
    %220 = vmatpush.bf16.msra.mxu0 %v197
    %221 = vmatmul.bf16.gmra.mxu0 %v163
    %v222 = vpop.f32.mrf.mxu0
    %v223 = vadd.f32 0.0, %v222
    %v224 = vpop.f32.mrf.mxu0
    %225 = vdwg.mxu0
    %v226 = vadd.f32 %v144, %v223
    %v227 = vld [vmem:[#allocation4 + $0x28] sm:$0xf]
    %v228 = vld [vmem:[#allocation4 + $0x5c] sm:$0xf]
    %v229 = vld [vmem:[#allocation4 + $0x90] sm:$0xf]
    %v230 = vld [vmem:[#allocation4 + $0xc4] sm:$0xf]
    %v231 = vld [vmem:[#allocation4 + $0xf8] sm:$0xf]
    %v232 = vld [vmem:[#allocation4 + $0x12c] sm:$0xf]
    %v233 = vld [vmem:[#allocation4 + $0x160] sm:$0xf]
    %v234 = vld [vmem:[#allocation4 + $0x194] sm:$0xf]
    %v235 = vld [vmem:[#allocation4 + $0x1c8] sm:$0xf]
    %v236 = vld [vmem:[#allocation4 + $0x1fc] sm:$0xf]
    %v237 = vld [vmem:[#allocation4 + $0x230] sm:$0xf]
    %v238 = vld [vmem:[#allocation4 + $0x264] sm:$0xf]
    %v239 = vld [vmem:[#allocation4 + $0x298] sm:$0xf]
    %v240 = vld [vmem:[#allocation4 + $0x2cc] sm:$0xf]
    %v241 = vld [vmem:[#allocation4 + $0x300] sm:$0xf]
    %v242 = vld [vmem:[#allocation4 + $0x334] sm:$0xf]
    %v259 = vunpack.c.l.b16 %v227
    %v260 = vunpack.c.l.b16 %v228
    %v261 = vunpack.c.l.b16 %v229
    %v262 = vunpack.c.l.b16 %v230
    %v263 = vunpack.c.l.b16 %v231
    %v264 = vunpack.c.l.b16 %v232
    %v265 = vunpack.c.l.b16 %v233
    %v266 = vunpack.c.l.b16 %v234
    %v267 = vunpack.c.l.b16 %v235
    %v268 = vunpack.c.l.b16 %v236
    %v269 = vunpack.c.l.b16 %v237
    %v270 = vunpack.c.l.b16 %v238
    %v271 = vunpack.c.l.b16 %v239
    %v272 = vunpack.c.l.b16 %v240
    %v273 = vunpack.c.l.b16 %v241
    %v274 = vunpack.c.l.b16 %v242
    %v275 = vpack.c.b16 %v260, %v259
    %v276 = vpack.c.b16 %v262, %v261
    %v277 = vpack.c.b16 %v264, %v263
    %v278 = vpack.c.b16 %v266, %v265
    %v279 = vpack.c.b16 %v268, %v267
    %v280 = vpack.c.b16 %v270, %v269
    %v281 = vpack.c.b16 %v272, %v271
    %v282 = vpack.c.b16 %v274, %v273
    %291 = vmatpush.bf16.msra.mxu0 %v282
    %292 = vmatpush.bf16.msra.mxu0 %v281
    %293 = vmatpush.bf16.msra.mxu0 %v280
    %294 = vmatpush.bf16.msra.mxu0 %v279
    %295 = vmatpush.bf16.msra.mxu0 %v278
    %296 = vmatpush.bf16.msra.mxu0 %v277
    %297 = vmatpush.bf16.msra.mxu0 %v276
    %298 = vmatpush.bf16.msra.mxu0 %v275
    %299 = vmatmul.bf16.gmra.mxu0 %v62
    %v300 = vpop.f32.mrf.mxu0
    %v301 = vadd.f32 0.0, %v300
    %v302 = vpop.f32.mrf.mxu0
    %303 = vdwg.mxu0
    %v304 = vadd.f32 %v226, %v301
    %v305 = vpack.c.bf16 %v304, %v304
    %v306 = vld [vmem:[#allocation4] sm:$0xff]
    %v307 = vld [vmem:[#allocation4 + $0x8] sm:$0xf]
    %v308 = vld [vmem:[#allocation4 + $0x34] sm:$0xff]
    %v309 = vld [vmem:[#allocation4 + $0x3c] sm:$0xf]
    %v310 = vld [vmem:[#allocation4 + $0x68] sm:$0xff]
    %v311 = vld [vmem:[#allocation4 + $0x70] sm:$0xf]
    %v312 = vld [vmem:[#allocation4 + $0x9c] sm:$0xff]
    %v313 = vld [vmem:[#allocation4 + $0xa4] sm:$0xf]
    %v314 = vld [vmem:[#allocation4 + $0xd0] sm:$0xff]
    %v315 = vld [vmem:[#allocation4 + $0xd8] sm:$0xf]
    %v316 = vld [vmem:[#allocation4 + $0x104] sm:$0xff]
    %v317 = vld [vmem:[#allocation4 + $0x10c] sm:$0xf]
    %v318 = vld [vmem:[#allocation4 + $0x138] sm:$0xff]
    %v319 = vld [vmem:[#allocation4 + $0x140] sm:$0xf]
    %v320 = vld [vmem:[#allocation4 + $0x16c] sm:$0xff]
    %v321 = vld [vmem:[#allocation4 + $0x174] sm:$0xf]
    %v322 = vld [vmem:[#allocation4 + $0x1a0] sm:$0xff]
    %v323 = vld [vmem:[#allocation4 + $0x1a8] sm:$0xf]
    %v324 = vld [vmem:[#allocation4 + $0x1d4] sm:$0xff]
    %v325 = vld [vmem:[#allocation4 + $0x1dc] sm:$0xf]
    %v326 = vld [vmem:[#allocation4 + $0x208] sm:$0xff]
    %v327 = vld [vmem:[#allocation4 + $0x210] sm:$0xf]
    %v328 = vld [vmem:[#allocation4 + $0x23c] sm:$0xff]
    %v329 = vld [vmem:[#allocation4 + $0x244] sm:$0xf]
    %v330 = vld [vmem:[#allocation4 + $0x270] sm:$0xff]
    %v331 = vld [vmem:[#allocation4 + $0x278] sm:$0xf]
    %v332 = vld [vmem:[#allocation4 + $0x2a4] sm:$0xff]
    %v333 = vld [vmem:[#allocation4 + $0x2ac] sm:$0xf]
    %v334 = vld [vmem:[#allocation4 + $0x2d8] sm:$0xff]
    %v335 = vld [vmem:[#allocation4 + $0x2e0] sm:$0xf]
    %v336 = vld [vmem:[#allocation4 + $0x30c] sm:$0xff]
    %v337 = vld [vmem:[#allocation4 + $0x314] sm:$0xf]
    %v338 = vld [vmem:[#allocation6 + $0x1] sm:$0x7]
    %v340 = vperm.slane %v338, 0
    %v341 = vperm.slane %v338, 1
    %v342 = vperm.slane %v338, 2
    %v378 = vunpack.c.l.b16 %v306
    %v379 = vunpack.c.h.b16 %v306
    %v380 = vunpack.c.l.b16 %v307
    %v381 = vunpack.c.l.b16 %v308
    %v382 = vunpack.c.h.b16 %v308
    %v383 = vunpack.c.l.b16 %v309
    %v384 = vunpack.c.l.b16 %v310
    %v385 = vunpack.c.h.b16 %v310
    %v386 = vunpack.c.l.b16 %v311
    %v387 = vunpack.c.l.b16 %v312
    %v388 = vunpack.c.h.b16 %v312
    %v389 = vunpack.c.l.b16 %v313
    %v390 = vunpack.c.l.b16 %v314
    %v391 = vunpack.c.h.b16 %v314
    %v392 = vunpack.c.l.b16 %v315
    %v393 = vunpack.c.l.b16 %v316
    %v394 = vunpack.c.h.b16 %v316
    %v395 = vunpack.c.l.b16 %v317
    %v396 = vunpack.c.l.b16 %v318
    %v397 = vunpack.c.h.b16 %v318
    %v398 = vunpack.c.l.b16 %v319
    %v399 = vunpack.c.l.b16 %v320
    %v400 = vunpack.c.h.b16 %v320
    %v401 = vunpack.c.l.b16 %v321
    %v402 = vunpack.c.l.b16 %v322
    %v403 = vunpack.c.h.b16 %v322
    %v404 = vunpack.c.l.b16 %v323
    %v405 = vunpack.c.l.b16 %v324
    %v406 = vunpack.c.h.b16 %v324
    %v407 = vunpack.c.l.b16 %v325
    %v408 = vunpack.c.l.b16 %v326
    %v409 = vunpack.c.h.b16 %v326
    %v410 = vunpack.c.l.b16 %v327
    %v411 = vunpack.c.l.b16 %v328
    %v412 = vunpack.c.h.b16 %v328
    %v413 = vunpack.c.l.b16 %v329
    %v414 = vunpack.c.l.b16 %v330
    %v415 = vunpack.c.h.b16 %v330
    %v416 = vunpack.c.l.b16 %v331
    %v417 = vunpack.c.l.b16 %v332
    %v418 = vunpack.c.h.b16 %v332
    %v419 = vunpack.c.l.b16 %v333
    %v420 = vunpack.c.l.b16 %v334
    %v421 = vunpack.c.h.b16 %v334
    %v422 = vunpack.c.l.b16 %v335
    %v423 = vunpack.c.l.b16 %v336
    %v424 = vunpack.c.h.b16 %v336
    %v425 = vunpack.c.l.b16 %v337
    %v426 = vpack.c.b16 %v381, %v378
    %v427 = vpack.c.b16 %v382, %v379
    %v428 = vpack.c.b16 %v383, %v380
    %v429 = vpack.c.b16 %v387, %v384
    %v430 = vpack.c.b16 %v388, %v385
    %v431 = vpack.c.b16 %v389, %v386
    %v432 = vpack.c.b16 %v393, %v390
    %v433 = vpack.c.b16 %v394, %v391
    %v434 = vpack.c.b16 %v395, %v392
    %v435 = vpack.c.b16 %v399, %v396
    %v436 = vpack.c.b16 %v400, %v397
    %v437 = vpack.c.b16 %v401, %v398
    %v438 = vpack.c.b16 %v405, %v402
    %v439 = vpack.c.b16 %v406, %v403
    %v440 = vpack.c.b16 %v407, %v404
    %v441 = vpack.c.b16 %v411, %v408
    %v442 = vpack.c.b16 %v412, %v409
    %v443 = vpack.c.b16 %v413, %v410
    %v444 = vpack.c.b16 %v417, %v414
    %v445 = vpack.c.b16 %v418, %v415
    %v446 = vpack.c.b16 %v419, %v416
    %v447 = vpack.c.b16 %v423, %v420
    %v448 = vpack.c.b16 %v424, %v421
    %v449 = vpack.c.b16 %v425, %v422
    %474 = vmatpush.bf16.msra.mxu0 %v447
    %475 = vmatpush.bf16.msra.mxu0 %v444
    %476 = vmatpush.bf16.msra.mxu0 %v441
    %477 = vmatpush.bf16.msra.mxu0 %v438
    %478 = vmatpush.bf16.msra.mxu0 %v435
    %479 = vmatpush.bf16.msra.mxu0 %v432
    %480 = vmatpush.bf16.msra.mxu0 %v429
    %481 = vmatpush.bf16.msra.mxu0 %v426
    %482 = vmatmul.bf16.gmra.mxu0 %v305
    %v483 = vpop.f32.mrf.mxu0
    %v484 = vadd.f32 %v340, %v483
    %v485 = vpop.f32.mrf.mxu0
    %486 = vdwg.mxu0
    %487 = vmatpush.bf16.msra.mxu0 %v448
    %488 = vmatpush.bf16.msra.mxu0 %v445
    %489 = vmatpush.bf16.msra.mxu0 %v442
    %490 = vmatpush.bf16.msra.mxu0 %v439
    %491 = vmatpush.bf16.msra.mxu0 %v436
    %492 = vmatpush.bf16.msra.mxu0 %v433
    %493 = vmatpush.bf16.msra.mxu0 %v430
    %494 = vmatpush.bf16.msra.mxu0 %v427
    %495 = vmatmul.bf16.gmra.mxu0 %v305
    %v496 = vpop.f32.mrf.mxu0
    %v497 = vadd.f32 %v341, %v496
    %v498 = vpop.f32.mrf.mxu0
    %499 = vdwg.mxu0
    %500 = vmatpush.bf16.msra.mxu0 %v449
    %501 = vmatpush.bf16.msra.mxu0 %v446
    %502 = vmatpush.bf16.msra.mxu0 %v443
    %503 = vmatpush.bf16.msra.mxu0 %v440
    %504 = vmatpush.bf16.msra.mxu0 %v437
    %505 = vmatpush.bf16.msra.mxu0 %v434
    %506 = vmatpush.bf16.msra.mxu0 %v431
    %507 = vmatpush.bf16.msra.mxu0 %v428
    %508 = vmatmul.bf16.gmra.mxu0 %v305
    %v509 = vpop.f32.mrf.mxu0
    %v510 = vadd.f32 %v342, %v509
    %v511 = vpop.f32.mrf.mxu0
    %512 = vdwg.mxu0
    %v513 = vpack.c.bf16 %v484, %v484
    %v514 = vpack.c.bf16 %v497, %v497
    %v515 = vpack.c.bf16 %v510, %v510
    %vm516 = vcmask 261120
    %v518 = vsel %vm516, %v513, 0
    %v521 = vsel %vm516, %v514, 0
    %523 = vmatpush.bf16.xpose.msra.mxu0 0
    %524 = vmatpush.bf16.xpose.msra.mxu0 0
    %525 = vmatpush.bf16.xpose.msra.mxu0 0
    %526 = vmatpush.bf16.xpose.msra.mxu0 0
    %527 = vmatpush.bf16.xpose.msra.mxu0 0
    %528 = vmatpush.bf16.xpose.msra.mxu0 0
    %529 = vmatpush.bf16.xpose.msra.mxu0 0
    %530 = vmatpush.bf16.xpose.msra.mxu0 %v521
    %531 = vmatmul.bf16.gmra.mxu0 %v518
    %v532 = vpop.f32.mrf.mxu0
    %v533 = vadd.f32 0.0, %v532
    %v534 = vpop.f32.mrf.mxu0
    %535 = vdwg.mxu0
    %v537 = vunpack.c.l.b16 %v513
    %v538 = vpack.c.b16 %v537, %v537
    %539 = vrot.lane.b32.xlu0 %v538, 96
    %v540 = vpop.permute.xlu0 %539
    %v542 = vunpack.c.l.b16 %v514
    %v543 = vpack.c.b16 %v542, %v542
    %544 = vrot.lane.b32.xlu0 %v543, 96
    %v545 = vpop.permute.xlu0 %544
    %v547 = vsel %vm516, %v540, 0
    %v550 = vsel %vm516, %v545, 0
    %552 = vmatpush.bf16.xpose.msra.mxu0 0
    %553 = vmatpush.bf16.xpose.msra.mxu0 0
    %554 = vmatpush.bf16.xpose.msra.mxu0 0
    %555 = vmatpush.bf16.xpose.msra.mxu0 0
    %556 = vmatpush.bf16.xpose.msra.mxu0 0
    %557 = vmatpush.bf16.xpose.msra.mxu0 0
    %558 = vmatpush.bf16.xpose.msra.mxu0 0
    %559 = vmatpush.bf16.xpose.msra.mxu0 %v550
    %560 = vmatmul.bf16.gmra.mxu0 %v547
    %v561 = vpop.f32.mrf.mxu0
    %v562 = vadd.f32 0.0, %v561
    %v563 = vpop.f32.mrf.mxu0
    %564 = vdwg.mxu0
    %565 = vrot.lane.b32.xlu0 %v538, 64
    %v566 = vpop.permute.xlu0 %565
    %567 = vrot.lane.b32.xlu0 %v543, 64
    %v568 = vpop.permute.xlu0 %567
    %v570 = vsel %vm516, %v566, 0
    %v573 = vsel %vm516, %v568, 0
    %575 = vmatpush.bf16.xpose.msra.mxu0 0
    %576 = vmatpush.bf16.xpose.msra.mxu0 0
    %577 = vmatpush.bf16.xpose.msra.mxu0 0
    %578 = vmatpush.bf16.xpose.msra.mxu0 0
    %579 = vmatpush.bf16.xpose.msra.mxu0 0
    %580 = vmatpush.bf16.xpose.msra.mxu0 0
    %581 = vmatpush.bf16.xpose.msra.mxu0 0
    %582 = vmatpush.bf16.xpose.msra.mxu0 %v573
    %583 = vmatmul.bf16.gmra.mxu0 %v570
    %v584 = vpop.f32.mrf.mxu0
    %v585 = vadd.f32 0.0, %v584
    %v586 = vpop.f32.mrf.mxu0
    %587 = vdwg.mxu0
    %588 = vrot.lane.b32.xlu0 %v538, 32
    %v589 = vpop.permute.xlu0 %588
    %590 = vrot.lane.b32.xlu0 %v543, 32
    %v591 = vpop.permute.xlu0 %590
    %v593 = vsel %vm516, %v589, 0
    %v596 = vsel %vm516, %v591, 0
    %598 = vmatpush.bf16.xpose.msra.mxu0 0
    %599 = vmatpush.bf16.xpose.msra.mxu0 0
    %600 = vmatpush.bf16.xpose.msra.mxu0 0
    %601 = vmatpush.bf16.xpose.msra.mxu0 0
    %602 = vmatpush.bf16.xpose.msra.mxu0 0
    %603 = vmatpush.bf16.xpose.msra.mxu0 0
    %604 = vmatpush.bf16.xpose.msra.mxu0 0
    %605 = vmatpush.bf16.xpose.msra.mxu0 %v596
    %606 = vmatmul.bf16.gmra.mxu0 %v593
    %v607 = vpop.f32.mrf.mxu0
    %v608 = vadd.f32 0.0, %v607
    %v609 = vpop.f32.mrf.mxu0
    %610 = vdwg.mxu0
    %vm611 = vcmask 64512
    %v612 = vsel %vm611, %v533, -inf
    %613 = vmax.xlane.f32.xlu0 %v612
    %v614 = vpop.xlane.xlu0 %613
    %v615 = vsel %vm611, %v562, -inf
    %616 = vmax.xlane.f32.xlu0 %v615
    %v617 = vpop.xlane.xlu0 %616
    %v618 = vsel %vm611, %v585, -inf
    %619 = vmax.xlane.f32.xlu0 %v618
    %v620 = vpop.xlane.xlu0 %619
    %v621 = vsel %vm611, %v608, -inf
    %622 = vmax.xlane.f32.xlu0 %v621
    %v623 = vpop.xlane.xlu0 %622
    %v624 = vsub.f32 %v533, %v614
    %v625 = vsub.f32 %v562, %v617
    %v626 = vsub.f32 %v585, %v620
    %v627 = vsub.f32 %v608, %v623
    %v628 = vmul.f32 %v624, 1.442695
    %v629 = vpow.pop %v628
    %v630 = vmul.f32 %v625, 1.442695
    %v631 = vpow.pop %v630
    %v632 = vmul.f32 %v626, 1.442695
    %v633 = vpow.pop %v632
    %v634 = vmul.f32 %v627, 1.442695
    %v635 = vpow.pop %v634
    %v636 = vsel %vm611, %v629, 0.0
    %637 = vadd.xlane.f32.xlu0 %v636
    %v638 = vpop.xlane.xlu0 %637
    %v639 = vsel %vm611, %v631, 0.0
    %640 = vadd.xlane.f32.xlu0 %v639
    %v641 = vpop.xlane.xlu0 %640
    %v642 = vsel %vm611, %v633, 0.0
    %643 = vadd.xlane.f32.xlu0 %v642
    %v644 = vpop.xlane.xlu0 %643
    %v645 = vsel %vm611, %v635, 0.0
    %646 = vadd.xlane.f32.xlu0 %v645
    %v647 = vpop.xlane.xlu0 %646
    %v648 = vrcp.pop %v638
    %v649 = vrcp.pop %v641
    %v650 = vrcp.pop %v644
    %v651 = vrcp.pop %v647
    %v652 = vmul.f32 %v629, %v648
    %v653 = vmul.f32 %v631, %v649
    %v654 = vmul.f32 %v633, %v650
    %v655 = vmul.f32 %v635, %v651
    %v656 = vld [vmem:[#allocation6 + $0x4] sm:$0x1]
    %v657 = vpack.c.bf16 %v652, %v652
    %v659 = vsel %vm611, %v657, 0
    %vm661 = vcmask 1043456
    %v663 = vsel %vm661, %v515, 0
    %665 = vmatpush.bf16.msra.mxu0 0
    %666 = vmatpush.bf16.msra.mxu0 0
    %667 = vmatpush.bf16.msra.mxu0 0
    %668 = vmatpush.bf16.msra.mxu0 0
    %669 = vmatpush.bf16.msra.mxu0 0
    %670 = vmatpush.bf16.msra.mxu0 0
    %671 = vmatpush.bf16.msra.mxu0 0
    %672 = vmatpush.bf16.msra.mxu0 %v663
    %673 = vmatmul.bf16.gmra.mxu0 %v659
    %v674 = vpop.f32.mrf.mxu0
    %v675 = vadd.f32 0.0, %v674
    %v676 = vpop.f32.mrf.mxu0
    %677 = vdwg.mxu0
    %v678 = vpack.c.bf16 %v675, %v675
    %v679 = vld [vmem:[#allocation4 + $0xc] sm:$0xf]
    %v680 = vld [vmem:[#allocation4 + $0x40] sm:$0xf]
    %v681 = vld [vmem:[#allocation4 + $0x74] sm:$0xf]
    %v682 = vld [vmem:[#allocation4 + $0xa8] sm:$0xf]
    %v687 = vunpack.c.l.b16 %v679
    %v688 = vunpack.c.l.b16 %v680
    %v689 = vunpack.c.l.b16 %v681
    %v690 = vunpack.c.l.b16 %v682
    %v691 = vpack.c.b16 %v688, %v687
    %v692 = vpack.c.b16 %v690, %v689
    %v696 = vsel %vm516, %v678, 0
    %698 = vmatpush.bf16.msra.mxu0 0
    %699 = vmatpush.bf16.msra.mxu0 0
    %700 = vmatpush.bf16.msra.mxu0 0
    %701 = vmatpush.bf16.msra.mxu0 0
    %702 = vmatpush.bf16.msra.mxu0 0
    %703 = vmatpush.bf16.msra.mxu0 0
    %704 = vmatpush.bf16.msra.mxu0 %v692
    %705 = vmatpush.bf16.msra.mxu0 %v691
    %706 = vmatmul.bf16.gmra.mxu0 %v696
    %v707 = vpop.f32.mrf.mxu0
    %v708 = vadd.f32 0.0, %v707
    %v709 = vpop.f32.mrf.mxu0
    %710 = vdwg.mxu0
    %v712 = vperm.slane %v656, 0
    %v714 = vadd.f32 %v712, %v708
    %v715 = vpack.c.bf16 %v653, %v653
    %v717 = vunpack.c.l.b16 %v515
    %v718 = vpack.c.b16 %v717, %v717
    %719 = vrot.lane.b32.xlu0 %v718, 96
    %v720 = vpop.permute.xlu0 %719
    %v722 = vsel %vm611, %v715, 0
    %v725 = vsel %vm661, %v720, 0
    %727 = vmatpush.bf16.msra.mxu0 0
    %728 = vmatpush.bf16.msra.mxu0 0
    %729 = vmatpush.bf16.msra.mxu0 0
    %730 = vmatpush.bf16.msra.mxu0 0
    %731 = vmatpush.bf16.msra.mxu0 0
    %732 = vmatpush.bf16.msra.mxu0 0
    %733 = vmatpush.bf16.msra.mxu0 0
    %734 = vmatpush.bf16.msra.mxu0 %v725
    %735 = vmatmul.bf16.gmra.mxu0 %v722
    %v736 = vpop.f32.mrf.mxu0
    %v737 = vadd.f32 0.0, %v736
    %v738 = vpop.f32.mrf.mxu0
    %739 = vdwg.mxu0
    %v740 = vpack.c.bf16 %v737, %v737
    %v741 = vld [vmem:[#allocation4 + $0xdc] sm:$0xf]
    %v742 = vld [vmem:[#allocation4 + $0x110] sm:$0xf]
    %v743 = vld [vmem:[#allocation4 + $0x144] sm:$0xf]
    %v744 = vld [vmem:[#allocation4 + $0x178] sm:$0xf]
    %v749 = vunpack.c.l.b16 %v741
    %v750 = vunpack.c.l.b16 %v742
    %v751 = vunpack.c.l.b16 %v743
    %v752 = vunpack.c.l.b16 %v744
    %v753 = vpack.c.b16 %v750, %v749
    %v754 = vpack.c.b16 %v752, %v751
    %v758 = vsel %vm516, %v740, 0
    %760 = vmatpush.bf16.msra.mxu0 0
    %761 = vmatpush.bf16.msra.mxu0 0
    %762 = vmatpush.bf16.msra.mxu0 0
    %763 = vmatpush.bf16.msra.mxu0 0
    %764 = vmatpush.bf16.msra.mxu0 0
    %765 = vmatpush.bf16.msra.mxu0 0
    %766 = vmatpush.bf16.msra.mxu0 %v754
    %767 = vmatpush.bf16.msra.mxu0 %v753
    %768 = vmatmul.bf16.gmra.mxu0 %v758
    %v769 = vpop.f32.mrf.mxu0
    %v770 = vadd.f32 0.0, %v769
    %v771 = vpop.f32.mrf.mxu0
    %772 = vdwg.mxu0
    %v773 = vadd.f32 %v714, %v770
    %v774 = vpack.c.bf16 %v654, %v654
    %775 = vrot.lane.b32.xlu0 %v718, 64
    %v776 = vpop.permute.xlu0 %775
    %v778 = vsel %vm611, %v774, 0
    %v781 = vsel %vm661, %v776, 0
    %783 = vmatpush.bf16.msra.mxu0 0
    %784 = vmatpush.bf16.msra.mxu0 0
    %785 = vmatpush.bf16.msra.mxu0 0
    %786 = vmatpush.bf16.msra.mxu0 0
    %787 = vmatpush.bf16.msra.mxu0 0
    %788 = vmatpush.bf16.msra.mxu0 0
    %789 = vmatpush.bf16.msra.mxu0 0
    %790 = vmatpush.bf16.msra.mxu0 %v781
    %791 = vmatmul.bf16.gmra.mxu0 %v778
    %v792 = vpop.f32.mrf.mxu0
    %v793 = vadd.f32 0.0, %v792
    %v794 = vpop.f32.mrf.mxu0
    %795 = vdwg.mxu0
    %v796 = vpack.c.bf16 %v793, %v793
    %v797 = vld [vmem:[#allocation4 + $0x1ac] sm:$0xf]
    %v798 = vld [vmem:[#allocation4 + $0x1e0] sm:$0xf]
    %v799 = vld [vmem:[#allocation4 + $0x214] sm:$0xf]
    %v800 = vld [vmem:[#allocation4 + $0x248] sm:$0xf]
    %v805 = vunpack.c.l.b16 %v797
    %v806 = vunpack.c.l.b16 %v798
    %v807 = vunpack.c.l.b16 %v799
    %v808 = vunpack.c.l.b16 %v800
    %v809 = vpack.c.b16 %v806, %v805
    %v810 = vpack.c.b16 %v808, %v807
    %v814 = vsel %vm516, %v796, 0
    %816 = vmatpush.bf16.msra.mxu0 0
    %817 = vmatpush.bf16.msra.mxu0 0
    %818 = vmatpush.bf16.msra.mxu0 0
    %819 = vmatpush.bf16.msra.mxu0 0
    %820 = vmatpush.bf16.msra.mxu0 0
    %821 = vmatpush.bf16.msra.mxu0 0
    %822 = vmatpush.bf16.msra.mxu0 %v810
    %823 = vmatpush.bf16.msra.mxu0 %v809
    %824 = vmatmul.bf16.gmra.mxu0 %v814
    %v825 = vpop.f32.mrf.mxu0
    %v826 = vadd.f32 0.0, %v825
    %v827 = vpop.f32.mrf.mxu0
    %828 = vdwg.mxu0
    %v829 = vadd.f32 %v773, %v826
    %v830 = vpack.c.bf16 %v655, %v655
    %831 = vrot.lane.b32.xlu0 %v718, 32
    %v832 = vpop.permute.xlu0 %831
    %v834 = vsel %vm611, %v830, 0
    %v837 = vsel %vm661, %v832, 0
    %839 = vmatpush.bf16.msra.mxu0 0
    %840 = vmatpush.bf16.msra.mxu0 0
    %841 = vmatpush.bf16.msra.mxu0 0
    %842 = vmatpush.bf16.msra.mxu0 0
    %843 = vmatpush.bf16.msra.mxu0 0
    %844 = vmatpush.bf16.msra.mxu0 0
    %845 = vmatpush.bf16.msra.mxu0 0
    %846 = vmatpush.bf16.msra.mxu0 %v837
    %847 = vmatmul.bf16.gmra.mxu0 %v834
    %v848 = vpop.f32.mrf.mxu0
    %v849 = vadd.f32 0.0, %v848
    %v850 = vpop.f32.mrf.mxu0
    %851 = vdwg.mxu0
    %v852 = vpack.c.bf16 %v849, %v849
    %v853 = vld [vmem:[#allocation4 + $0x27c] sm:$0xf]
    %v854 = vld [vmem:[#allocation4 + $0x2b0] sm:$0xf]
    %v855 = vld [vmem:[#allocation4 + $0x2e4] sm:$0xf]
    %v856 = vld [vmem:[#allocation4 + $0x318] sm:$0xf]
    %v861 = vunpack.c.l.b16 %v853
    %v862 = vunpack.c.l.b16 %v854
    %v863 = vunpack.c.l.b16 %v855
    %v864 = vunpack.c.l.b16 %v856
    %v865 = vpack.c.b16 %v862, %v861
    %v866 = vpack.c.b16 %v864, %v863
    %v870 = vsel %vm516, %v852, 0
    %872 = vmatpush.bf16.msra.mxu0 0
    %873 = vmatpush.bf16.msra.mxu0 0
    %874 = vmatpush.bf16.msra.mxu0 0
    %875 = vmatpush.bf16.msra.mxu0 0
    %876 = vmatpush.bf16.msra.mxu0 0
    %877 = vmatpush.bf16.msra.mxu0 0
    %878 = vmatpush.bf16.msra.mxu0 %v866
    %879 = vmatpush.bf16.msra.mxu0 %v865
    %880 = vmatmul.bf16.gmra.mxu0 %v870
    %v881 = vpop.f32.mrf.mxu0
    %v882 = vadd.f32 0.0, %v881
    %v883 = vpop.f32.mrf.mxu0
    %884 = vdwg.mxu0
    %v885 = vadd.f32 %v829, %v882
    %v886 = vadd.f32 %v304, %v885
    %v887 = vld [vmem:[#allocation6 + $0x5] sm:$0x1]
    %v888 = vld [vmem:[#allocation6 + $0x6] sm:$0x1]
    %889 = vadd.xlane.f32.xlu0 %v886
    %v890 = vpop.xlane.xlu0 %889
    %v891 = vrcp.pop 128.0
    %v892 = vmul.f32 128.0, %v891
    %v893 = vsub.f32 1.0, %v892
    %v894 = vmul.f32 %v891, %v893
    %v895 = vadd.f32 %v891, %v894
    %vm896 = vweird.f32 %v891
    %v897 = vsel %vm896, %v891, %v895
    %v898 = vmul.f32 %v890, %v897
    %v899 = vsub.f32 %v886, %v898
    %v900 = vmul.f32 %v899, %v899
    %901 = vadd.xlane.f32.xlu0 %v900
    %v902 = vpop.xlane.xlu0 %901
    %v903 = vmul.f32 %v902, %v897
    %v904 = vadd.f32 %v903, 1e-05
    %v905 = vrsqrt.pop %v904
    %v906 = vmul.f32 %v905, %v904
    %v907 = vmul.f32 %v906, %v905
    %v908 = vmul.f32 0.5, %v907
    %v909 = vsub.f32 1.5, %v908
    %v910 = vmul.f32 %v905, %v909
    %vm911 = vweird.f32 %v904
    %vm912 = vweird.f32 %v905
    %vm913 = vmor %vm911, %vm912
    %v914 = vsel %vm913, %v905, %v910
    %v915 = vmul.f32 %v899, %v914
    %v917 = vperm.slane %v887, 0
    %v919 = vmul.f32 %v915, %v917
    %v921 = vperm.slane %v888, 0
    %v923 = vadd.f32 %v919, %v921
    %v924 = vpack.c.bf16 %v923, %v923
    %v925 = vld [vmem:[#allocation4 + $0x10] sm:$0xff]
    %v926 = vld [vmem:[#allocation4 + $0x44] sm:$0xff]
    %v927 = vld [vmem:[#allocation4 + $0x78] sm:$0xff]
    %v928 = vld [vmem:[#allocation4 + $0xac] sm:$0xff]
    %v929 = vld [vmem:[#allocation4 + $0xe0] sm:$0xff]
    %v930 = vld [vmem:[#allocation4 + $0x114] sm:$0xff]
    %v931 = vld [vmem:[#allocation4 + $0x148] sm:$0xff]
    %v932 = vld [vmem:[#allocation4 + $0x17c] sm:$0xff]
    %v933 = vld [vmem:[#allocation4 + $0x1b0] sm:$0xff]
    %v934 = vld [vmem:[#allocation4 + $0x1e4] sm:$0xff]
    %v935 = vld [vmem:[#allocation4 + $0x218] sm:$0xff]
    %v936 = vld [vmem:[#allocation4 + $0x24c] sm:$0xff]
    %v937 = vld [vmem:[#allocation4 + $0x280] sm:$0xff]
    %v938 = vld [vmem:[#allocation4 + $0x2b4] sm:$0xff]
    %v939 = vld [vmem:[#allocation4 + $0x2e8] sm:$0xff]
    %v940 = vld [vmem:[#allocation4 + $0x31c] sm:$0xff]
    %v941 = vld [vmem:[#allocation6 + $0x7] sm:$0x3]
    %v943 = vperm.slane %v941, 0
    %v944 = vperm.slane %v941, 1
    %v963 = vunpack.c.l.b16 %v925
    %v964 = vunpack.c.h.b16 %v925
    %v965 = vunpack.c.l.b16 %v926
    %v966 = vunpack.c.h.b16 %v926
    %v967 = vunpack.c.l.b16 %v927
    %v968 = vunpack.c.h.b16 %v927
    %v969 = vunpack.c.l.b16 %v928
    %v970 = vunpack.c.h.b16 %v928
    %v971 = vunpack.c.l.b16 %v929
    %v972 = vunpack.c.h.b16 %v929
    %v973 = vunpack.c.l.b16 %v930
    %v974 = vunpack.c.h.b16 %v930
    %v975 = vunpack.c.l.b16 %v931
    %v976 = vunpack.c.h.b16 %v931
    %v977 = vunpack.c.l.b16 %v932
    %v978 = vunpack.c.h.b16 %v932
    %v979 = vunpack.c.l.b16 %v933
    %v980 = vunpack.c.h.b16 %v933
    %v981 = vunpack.c.l.b16 %v934
    %v982 = vunpack.c.h.b16 %v934
    %v983 = vunpack.c.l.b16 %v935
    %v984 = vunpack.c.h.b16 %v935
    %v985 = vunpack.c.l.b16 %v936
    %v986 = vunpack.c.h.b16 %v936
    %v987 = vunpack.c.l.b16 %v937
    %v988 = vunpack.c.h.b16 %v937
    %v989 = vunpack.c.l.b16 %v938
    %v990 = vunpack.c.h.b16 %v938
    %v991 = vunpack.c.l.b16 %v939
    %v992 = vunpack.c.h.b16 %v939
    %v993 = vunpack.c.l.b16 %v940
    %v994 = vunpack.c.h.b16 %v940
    %v995 = vpack.c.b16 %v965, %v963
    %v996 = vpack.c.b16 %v966, %v964
    %v997 = vpack.c.b16 %v969, %v967
    %v998 = vpack.c.b16 %v970, %v968
    %v999 = vpack.c.b16 %v973, %v971
    %v1000 = vpack.c.b16 %v974, %v972
    %v1001 = vpack.c.b16 %v977, %v975
    %v1002 = vpack.c.b16 %v978, %v976
    %v1003 = vpack.c.b16 %v981, %v979
    %v1004 = vpack.c.b16 %v982, %v980
    %v1005 = vpack.c.b16 %v985, %v983
    %v1006 = vpack.c.b16 %v986, %v984
    %v1007 = vpack.c.b16 %v989, %v987
    %v1008 = vpack.c.b16 %v990, %v988
    %v1009 = vpack.c.b16 %v993, %v991
    %v1010 = vpack.c.b16 %v994, %v992
    %1027 = vmatpush.bf16.msra.mxu0 %v1009
    %1028 = vmatpush.bf16.msra.mxu0 %v1007
    %1029 = vmatpush.bf16.msra.mxu0 %v1005
    %1030 = vmatpush.bf16.msra.mxu0 %v1003
    %1031 = vmatpush.bf16.msra.mxu0 %v1001
    %1032 = vmatpush.bf16.msra.mxu0 %v999
    %1033 = vmatpush.bf16.msra.mxu0 %v997
    %1034 = vmatpush.bf16.msra.mxu0 %v995
    %1035 = vmatmul.bf16.gmra.mxu0 %v924
    %v1036 = vpop.f32.mrf.mxu0
    %v1037 = vadd.f32 %v943, %v1036
    %v1038 = vpop.f32.mrf.mxu0
    %1039 = vdwg.mxu0
    %1040 = vmatpush.bf16.msra.mxu0 %v1010
    %1041 = vmatpush.bf16.msra.mxu0 %v1008
    %1042 = vmatpush.bf16.msra.mxu0 %v1006
    %1043 = vmatpush.bf16.msra.mxu0 %v1004
    %1044 = vmatpush.bf16.msra.mxu0 %v1002
    %1045 = vmatpush.bf16.msra.mxu0 %v1000
    %1046 = vmatpush.bf16.msra.mxu0 %v998
    %1047 = vmatpush.bf16.msra.mxu0 %v996
    %1048 = vmatmul.bf16.gmra.mxu0 %v924
    %v1049 = vpop.f32.mrf.mxu0
    %v1050 = vadd.f32 %v944, %v1049
    %v1051 = vpop.f32.mrf.mxu0
    %1052 = vdwg.mxu0
    %v1053 = vmax.f32 %v1037, 0.0
    %v1054 = vmax.f32 %v1050, 0.0
    %v1055 = vpack.c.bf16 %v1054, %v1053
    %v1056 = vld [vmem:[#allocation6 + $0x9] sm:$0x1]
    %v1057 = vld [vmem:[#allocation4 + $0x2c] sm:$0xf]
    %v1058 = vld [vmem:[#allocation4 + $0x60] sm:$0xf]
    %v1059 = vld [vmem:[#allocation4 + $0x94] sm:$0xf]
    %v1060 = vld [vmem:[#allocation4 + $0xc8] sm:$0xf]
    %v1061 = vld [vmem:[#allocation4 + $0xfc] sm:$0xf]
    %v1062 = vld [vmem:[#allocation4 + $0x130] sm:$0xf]
    %v1063 = vld [vmem:[#allocation4 + $0x164] sm:$0xf]
    %v1064 = vld [vmem:[#allocation4 + $0x198] sm:$0xf]
    %v1065 = vld [vmem:[#allocation4 + $0x1cc] sm:$0xf]
    %v1066 = vld [vmem:[#allocation4 + $0x200] sm:$0xf]
    %v1067 = vld [vmem:[#allocation4 + $0x234] sm:$0xf]
    %v1068 = vld [vmem:[#allocation4 + $0x268] sm:$0xf]
    %v1069 = vld [vmem:[#allocation4 + $0x29c] sm:$0xf]
    %v1070 = vld [vmem:[#allocation4 + $0x2d0] sm:$0xf]
    %v1071 = vld [vmem:[#allocation4 + $0x304] sm:$0xf]
    %v1072 = vld [vmem:[#allocation4 + $0x338] sm:$0xf]
    %v1089 = vunpack.c.l.b16 %v1057
    %v1090 = vunpack.c.l.b16 %v1058
    %v1091 = vunpack.c.l.b16 %v1059
    %v1092 = vunpack.c.l.b16 %v1060
    %v1093 = vunpack.c.l.b16 %v1061
    %v1094 = vunpack.c.l.b16 %v1062
    %v1095 = vunpack.c.l.b16 %v1063
    %v1096 = vunpack.c.l.b16 %v1064
    %v1097 = vunpack.c.l.b16 %v1065
    %v1098 = vunpack.c.l.b16 %v1066
    %v1099 = vunpack.c.l.b16 %v1067
    %v1100 = vunpack.c.l.b16 %v1068
    %v1101 = vunpack.c.l.b16 %v1069
    %v1102 = vunpack.c.l.b16 %v1070
    %v1103 = vunpack.c.l.b16 %v1071
    %v1104 = vunpack.c.l.b16 %v1072
    %v1105 = vpack.c.b16 %v1090, %v1089
    %v1106 = vpack.c.b16 %v1092, %v1091
    %v1107 = vpack.c.b16 %v1094, %v1093
    %v1108 = vpack.c.b16 %v1096, %v1095
    %v1109 = vpack.c.b16 %v1098, %v1097
    %v1110 = vpack.c.b16 %v1100, %v1099
    %v1111 = vpack.c.b16 %v1102, %v1101
    %v1112 = vpack.c.b16 %v1104, %v1103
    %1121 = vmatpush.bf16.msra.mxu0 %v1112
    %1122 = vmatpush.bf16.msra.mxu0 %v1111
    %1123 = vmatpush.bf16.msra.mxu0 %v1110
    %1124 = vmatpush.bf16.msra.mxu0 %v1109
    %1125 = vmatpush.bf16.msra.mxu0 %v1108
    %1126 = vmatpush.bf16.msra.mxu0 %v1107
    %1127 = vmatpush.bf16.msra.mxu0 %v1106
    %1128 = vmatpush.bf16.msra.mxu0 %v1105
    %1129 = vmatmul.bf16.gmra.mxu0 %v1055
    %v1130 = vpop.f32.mrf.mxu0
    %v1131 = vadd.f32 0.0, %v1130
    %v1132 = vpop.f32.mrf.mxu0
    %1133 = vdwg.mxu0
    %v1135 = vperm.slane %v1056, 0
    %v1137 = vadd.f32 %v1135, %v1131
    %v1138 = vld [vmem:[#allocation4 + $0x30] sm:$0xf]
    %v1139 = vld [vmem:[#allocation4 + $0x64] sm:$0xf]
    %v1140 = vld [vmem:[#allocation4 + $0x98] sm:$0xf]
    %v1141 = vld [vmem:[#allocation4 + $0xcc] sm:$0xf]
    %v1142 = vld [vmem:[#allocation4 + $0x100] sm:$0xf]
    %v1143 = vld [vmem:[#allocation4 + $0x134] sm:$0xf]
    %v1144 = vld [vmem:[#allocation4 + $0x168] sm:$0xf]
    %v1145 = vld [vmem:[#allocation4 + $0x19c] sm:$0xf]
    %v1146 = vld [vmem:[#allocation4 + $0x1d0] sm:$0xf]
    %v1147 = vld [vmem:[#allocation4 + $0x204] sm:$0xf]
    %v1148 = vld [vmem:[#allocation4 + $0x238] sm:$0xf]
    %v1149 = vld [vmem:[#allocation4 + $0x26c] sm:$0xf]
    %v1150 = vld [vmem:[#allocation4 + $0x2a0] sm:$0xf]
    %v1151 = vld [vmem:[#allocation4 + $0x2d4] sm:$0xf]
    %v1152 = vld [vmem:[#allocation4 + $0x308] sm:$0xf]
    %v1153 = vld [vmem:[#allocation4 + $0x33c] sm:$0xf]
    %v1155 = vunpack.c.h.b16 %v1055
    %v1156 = vpack.c.b16 %v1155, %v1155
    %v1174 = vunpack.c.l.b16 %v1138
    %v1175 = vunpack.c.l.b16 %v1139
    %v1176 = vunpack.c.l.b16 %v1140
    %v1177 = vunpack.c.l.b16 %v1141
    %v1178 = vunpack.c.l.b16 %v1142
    %v1179 = vunpack.c.l.b16 %v1143
    %v1180 = vunpack.c.l.b16 %v1144
    %v1181 = vunpack.c.l.b16 %v1145
    %v1182 = vunpack.c.l.b16 %v1146
    %v1183 = vunpack.c.l.b16 %v1147
    %v1184 = vunpack.c.l.b16 %v1148
    %v1185 = vunpack.c.l.b16 %v1149
    %v1186 = vunpack.c.l.b16 %v1150
    %v1187 = vunpack.c.l.b16 %v1151
    %v1188 = vunpack.c.l.b16 %v1152
    %v1189 = vunpack.c.l.b16 %v1153
    %v1190 = vpack.c.b16 %v1175, %v1174
    %v1191 = vpack.c.b16 %v1177, %v1176
    %v1192 = vpack.c.b16 %v1179, %v1178
    %v1193 = vpack.c.b16 %v1181, %v1180
    %v1194 = vpack.c.b16 %v1183, %v1182
    %v1195 = vpack.c.b16 %v1185, %v1184
    %v1196 = vpack.c.b16 %v1187, %v1186
    %v1197 = vpack.c.b16 %v1189, %v1188
    %1206 = vmatpush.bf16.msra.mxu0 %v1197
    %1207 = vmatpush.bf16.msra.mxu0 %v1196
    %1208 = vmatpush.bf16.msra.mxu0 %v1195
    %1209 = vmatpush.bf16.msra.mxu0 %v1194
    %1210 = vmatpush.bf16.msra.mxu0 %v1193
    %1211 = vmatpush.bf16.msra.mxu0 %v1192
    %1212 = vmatpush.bf16.msra.mxu0 %v1191
    %1213 = vmatpush.bf16.msra.mxu0 %v1190
    %1214 = vmatmul.bf16.gmra.mxu0 %v1156
    %v1215 = vpop.f32.mrf.mxu0
    %v1216 = vadd.f32 0.0, %v1215
    %v1217 = vpop.f32.mrf.mxu0
    %1218 = vdwg.mxu0
    %v1219 = vadd.f32 %v1137, %v1216
    %v1220 = vadd.f32 %v923, %v1219
    %v1221 = vld [vmem:[#allocation6 + $0xa] sm:$0x1]
    %v1222 = vld [vmem:[#allocation6 + $0xb] sm:$0x1]
    %1223 = vadd.xlane.f32.xlu0 %v1220
    %v1224 = vpop.xlane.xlu0 %1223
    %v1225 = vmul.f32 %v1224, %v897
    %v1226 = vsub.f32 %v1220, %v1225
    %v1227 = vmul.f32 %v1226, %v1226
    %1228 = vadd.xlane.f32.xlu0 %v1227
    %v1229 = vpop.xlane.xlu0 %1228
    %v1230 = vmul.f32 %v1229, %v897
    %v1231 = vadd.f32 %v1230, 1e-05
    %v1232 = vrsqrt.pop %v1231
    %v1233 = vmul.f32 %v1232, %v1231
    %v1234 = vmul.f32 %v1233, %v1232
    %v1235 = vmul.f32 0.5, %v1234
    %v1236 = vsub.f32 1.5, %v1235
    %v1237 = vmul.f32 %v1232, %v1236
    %vm1238 = vweird.f32 %v1231
    %vm1239 = vweird.f32 %v1232
    %vm1240 = vmor %vm1238, %vm1239
    %v1241 = vsel %vm1240, %v1232, %v1237
    %v1242 = vmul.f32 %v1226, %v1241
    %v1244 = vperm.slane %v1221, 0
    %v1246 = vmul.f32 %v1242, %v1244
    %v1248 = vperm.slane %v1222, 0
    %v1250 = vadd.f32 %v1246, %v1248
    %v1251 = vpack.c.bf16 %v1250, %v1250
    %v1252 = vld [vmem:[#allocation4 + $0x18] sm:$0xf]
    %v1253 = vld [vmem:[#allocation4 + $0x4c] sm:$0xf]
    %v1254 = vld [vmem:[#allocation4 + $0x80] sm:$0xf]
    %v1255 = vld [vmem:[#allocation4 + $0xb4] sm:$0xf]
    %v1256 = vld [vmem:[#allocation4 + $0xe8] sm:$0xf]
    %v1257 = vld [vmem:[#allocation4 + $0x11c] sm:$0xf]
    %v1258 = vld [vmem:[#allocation4 + $0x150] sm:$0xf]
    %v1259 = vld [vmem:[#allocation4 + $0x184] sm:$0xf]
    %v1260 = vld [vmem:[#allocation4 + $0x1b8] sm:$0xf]
    %v1261 = vld [vmem:[#allocation4 + $0x1ec] sm:$0xf]
    %v1262 = vld [vmem:[#allocation4 + $0x220] sm:$0xf]
    %v1263 = vld [vmem:[#allocation4 + $0x254] sm:$0xf]
    %v1264 = vld [vmem:[#allocation4 + $0x288] sm:$0xf]
    %v1265 = vld [vmem:[#allocation4 + $0x2bc] sm:$0xf]
    %v1266 = vld [vmem:[#allocation4 + $0x2f0] sm:$0xf]
    %v1267 = vld [vmem:[#allocation4 + $0x324] sm:$0xf]
    %v1268 = vld [vmem:[#allocation6 + $0xc] sm:$0x1]
    %v1270 = vperm.slane %v1268, 0
    %v1288 = vunpack.c.l.b16 %v1252
    %v1289 = vunpack.c.l.b16 %v1253
    %v1290 = vunpack.c.l.b16 %v1254
    %v1291 = vunpack.c.l.b16 %v1255
    %v1292 = vunpack.c.l.b16 %v1256
    %v1293 = vunpack.c.l.b16 %v1257
    %v1294 = vunpack.c.l.b16 %v1258
    %v1295 = vunpack.c.l.b16 %v1259
    %v1296 = vunpack.c.l.b16 %v1260
    %v1297 = vunpack.c.l.b16 %v1261
    %v1298 = vunpack.c.l.b16 %v1262
    %v1299 = vunpack.c.l.b16 %v1263
    %v1300 = vunpack.c.l.b16 %v1264
    %v1301 = vunpack.c.l.b16 %v1265
    %v1302 = vunpack.c.l.b16 %v1266
    %v1303 = vunpack.c.l.b16 %v1267
    %v1304 = vpack.c.b16 %v1289, %v1288
    %v1305 = vpack.c.b16 %v1291, %v1290
    %v1306 = vpack.c.b16 %v1293, %v1292
    %v1307 = vpack.c.b16 %v1295, %v1294
    %v1308 = vpack.c.b16 %v1297, %v1296
    %v1309 = vpack.c.b16 %v1299, %v1298
    %v1310 = vpack.c.b16 %v1301, %v1300
    %v1311 = vpack.c.b16 %v1303, %v1302
    %1320 = vmatpush.bf16.msra.mxu0 %v1311
    %1321 = vmatpush.bf16.msra.mxu0 %v1310
    %1322 = vmatpush.bf16.msra.mxu0 %v1309
    %1323 = vmatpush.bf16.msra.mxu0 %v1308
    %1324 = vmatpush.bf16.msra.mxu0 %v1307
    %1325 = vmatpush.bf16.msra.mxu0 %v1306
    %1326 = vmatpush.bf16.msra.mxu0 %v1305
    %1327 = vmatpush.bf16.msra.mxu0 %v1304
    %1328 = vmatmul.bf16.gmra.mxu0 %v1251
    %v1329 = vpop.f32.mrf.mxu0
    %v1330 = vadd.f32 %v1270, %v1329
    %v1331 = vpop.f32.mrf.mxu0
    %1332 = vdwg.mxu0
    %v1333 = vmax.f32 %v1330, 0.0
    %v1334 = vpack.c.bf16 %v1333, %v1333
    %v1335 = vld [vmem:[#allocation4 + $0x1c] sm:$0xf]
    %v1336 = vld [vmem:[#allocation4 + $0x50] sm:$0xf]
    %v1337 = vld [vmem:[#allocation4 + $0x84] sm:$0xf]
    %v1338 = vld [vmem:[#allocation4 + $0xb8] sm:$0xf]
    %v1339 = vld [vmem:[#allocation4 + $0xec] sm:$0xf]
    %v1340 = vld [vmem:[#allocation4 + $0x120] sm:$0xf]
    %v1341 = vld [vmem:[#allocation4 + $0x154] sm:$0xf]
    %v1342 = vld [vmem:[#allocation4 + $0x188] sm:$0xf]
    %v1343 = vld [vmem:[#allocation4 + $0x1bc] sm:$0xf]
    %v1344 = vld [vmem:[#allocation4 + $0x1f0] sm:$0xf]
    %v1345 = vld [vmem:[#allocation4 + $0x224] sm:$0xf]
    %v1346 = vld [vmem:[#allocation4 + $0x258] sm:$0xf]
    %v1347 = vld [vmem:[#allocation4 + $0x28c] sm:$0xf]
    %v1348 = vld [vmem:[#allocation4 + $0x2c0] sm:$0xf]
    %v1349 = vld [vmem:[#allocation4 + $0x2f4] sm:$0xf]
    %v1350 = vld [vmem:[#allocation4 + $0x328] sm:$0xf]
    %v1351 = vld [vmem:[#allocation6 + $0xd] sm:$0x1]
    %v1353 = vperm.slane %v1351, 0
    %v1371 = vunpack.c.l.b16 %v1335
    %v1372 = vunpack.c.l.b16 %v1336
    %v1373 = vunpack.c.l.b16 %v1337
    %v1374 = vunpack.c.l.b16 %v1338
    %v1375 = vunpack.c.l.b16 %v1339
    %v1376 = vunpack.c.l.b16 %v1340
    %v1377 = vunpack.c.l.b16 %v1341
    %v1378 = vunpack.c.l.b16 %v1342
    %v1379 = vunpack.c.l.b16 %v1343
    %v1380 = vunpack.c.l.b16 %v1344
    %v1381 = vunpack.c.l.b16 %v1345
    %v1382 = vunpack.c.l.b16 %v1346
    %v1383 = vunpack.c.l.b16 %v1347
    %v1384 = vunpack.c.l.b16 %v1348
    %v1385 = vunpack.c.l.b16 %v1349
    %v1386 = vunpack.c.l.b16 %v1350
    %v1387 = vpack.c.b16 %v1372, %v1371
    %v1388 = vpack.c.b16 %v1374, %v1373
    %v1389 = vpack.c.b16 %v1376, %v1375
    %v1390 = vpack.c.b16 %v1378, %v1377
    %v1391 = vpack.c.b16 %v1380, %v1379
    %v1392 = vpack.c.b16 %v1382, %v1381
    %v1393 = vpack.c.b16 %v1384, %v1383
    %v1394 = vpack.c.b16 %v1386, %v1385
    %1403 = vmatpush.bf16.msra.mxu0 %v1394
    %1404 = vmatpush.bf16.msra.mxu0 %v1393
    %1405 = vmatpush.bf16.msra.mxu0 %v1392
    %1406 = vmatpush.bf16.msra.mxu0 %v1391
    %1407 = vmatpush.bf16.msra.mxu0 %v1390
    %1408 = vmatpush.bf16.msra.mxu0 %v1389
    %1409 = vmatpush.bf16.msra.mxu0 %v1388
    %1410 = vmatpush.bf16.msra.mxu0 %v1387
    %1411 = vmatmul.bf16.gmra.mxu0 %v1334
    %v1412 = vpop.f32.mrf.mxu0
    %v1413 = vadd.f32 %v1353, %v1412
    %v1414 = vpop.f32.mrf.mxu0
    %1415 = vdwg.mxu0
    %1416 = vst [vmem:[%s3] sm:$0xff] %v1413
    // Predicated region
    $region26: #{transformer_classifier.1} parent=1 // pred_check
      _
    $region27: #{transformer_classifier.1} parent=1 // pred_check_branch
      %1418 = sbr.rel (0) target = $region29
    $region28: #{transformer_classifier.1} parent=1 // pred_region
      _
    $region29: #{transformer_classifier.1} parent=1 // pred_fallthru
      _
    // Predicated region
    $region30: #{transformer_classifier.1} parent=1 // pred_check
      _
    $region31: #{transformer_classifier.1} parent=1 // pred_check_branch
      %1420 = sbr.rel (0) target = $region33
    $region32: #{transformer_classifier.1} parent=1 // pred_region
      _
    $region33: #{transformer_classifier.1} parent=1 // pred_fallthru
      _
    %1421 = vsyncpa [#allocation3], 1
    %1422 = vsyncpa [#allocation5], 1

</llo_original>
